<compile_context>
chip_gen: v7x
topology: tpu7x:2x2x1
jax: 0.10.0
libtpu: 0.0.40
codegen_flags: <defaults>
</compile_context>

<pallas_src>
import jax
import jax.numpy as jnp
from jax.experimental import pallas as pl
from jax.experimental.pallas import tpu as pltpu


def synapse_kernel(x_ref, w_ref, q_ref, k_ref, o_ref):
    # x_ref : [Tb, D]        block of input rows
    # w_ref : [num, D]       synapse weights (fully resident)
    # q_ref : [num, D]       thresholds
    # k_ref : [num, D]       steepness
    # o_ref : [Tb, num*D]    lane-dense flattened output block
    x = x_ref[...].astype(jnp.float32)                    # [Tb, D]
    num, d = w_ref.shape

    # Static unroll over the (small) dendrite axis: each iteration is a
    # lane-dense [Tb, D] elementwise chain, stored to an aligned lane band.
    for n in range(num):
        wn = w_ref[pl.ds(n, 1), :].astype(jnp.float32)    # [1, D] (sublane bcast)
        qn = q_ref[pl.ds(n, 1), :].astype(jnp.float32)
        kn = k_ref[pl.ds(n, 1), :].astype(jnp.float32)
        z = kn * (x * wn - qn)                            # [Tb, D]
        y = 1.0 / (1.0 + jnp.exp(-z))                     # sigmoid (exp -> EUP)
        o_ref[:, pl.ds(n * d, d)] = y.astype(o_ref.dtype)


def synapse_forward(x, w, q, k, *, row_tile=256):
    B, D = x.shape
    num, D2 = w.shape
    assert D == D2 and q.shape == (num, D) and k.shape == (num, D)
    F = num * D

    # Pad the row dimension instead of asserting divisibility.
    n_blocks = pl.cdiv(B, row_tile)
    pB = n_blocks * row_tile
    if pB != B:
        x = jnp.pad(x, ((0, pB - B), (0, 0)))

    out_flat = pl.pallas_call(
        synapse_kernel,
        out_shape=jax.ShapeDtypeStruct((pB, F), jnp.float32),
        grid_spec=pltpu.PrefetchScalarGridSpec(
            num_scalar_prefetch=0,
            grid=(n_blocks,),
            in_specs=[
                pl.BlockSpec((row_tile, D), lambda i: (i, 0)),   # x rows
                pl.BlockSpec((num, D), lambda i: (0, 0)),        # w (constant)
                pl.BlockSpec((num, D), lambda i: (0, 0)),        # q (constant)
                pl.BlockSpec((num, D), lambda i: (0, 0)),        # k (constant)
            ],
            out_specs=pl.BlockSpec((row_tile, F), lambda i: (i, 0)),
        ),
        compiler_params=pltpu.CompilerParams(
            dimension_semantics=("parallel",)),
    )(x, w, q, k)

    # [pB, num*D] -> drop padding -> [B, num, D]
    return out_flat[:B].reshape(B, num, D)


def synapse_reference(x, w, q, k):
    """Pure-JAX mirror of the PyTorch forward for verification."""
    xx = x[:, None, :]                                    # [B, 1, D]
    return 1.0 / (1.0 + jnp.exp(-k * (xx * w - q)))       # [B, num, D]


if __name__ == "__main__":
    # Small shapes consistent with the module: x [B, D]; w/q/k [num, D].
    # B=500 exercises the row-padding path (padded to 512 -> grid of 2 so
    # both v7x TensorCores get work).
    B, D, NUM = 500, 128, 8

    key = jax.random.PRNGKey(0)
    k_x, k_w, k_q, k_k = jax.random.split(key, 4)

    x = jax.random.normal(k_x, (B, D), dtype=jnp.float32)
    w = jax.random.uniform(k_w, (NUM, D), dtype=jnp.float32)
    q = jax.random.uniform(k_q, (NUM, D), dtype=jnp.float32)
    k = jax.random.uniform(k_k, (NUM, D), dtype=jnp.float32,
                           minval=0.5, maxval=1.5)

    out = jax.block_until_ready(synapse_forward(x, w, q, k))
    ref = jax.block_until_ready(synapse_reference(x, w, q, k))

    assert out.shape == (B, NUM, D), out.shape
    assert jnp.allclose(out, ref, atol=1e-5, rtol=1e-5), (
        float(jnp.max(jnp.abs(out - ref))))

    print("KERNEL_OK")
</pallas_src>

<mosaic_0001>
module attributes {stable_mosaic.version = 11 : i64} {
  func.func @synapse_kernel(%arg0: i32, %arg1: memref<256x128xf32, #tpu.memory_space<vmem>>, %arg2: memref<8x128xf32, #tpu.memory_space<vmem>>, %arg3: memref<8x128xf32, #tpu.memory_space<vmem>>, %arg4: memref<8x128xf32, #tpu.memory_space<vmem>>, %arg5: memref<256x1024xf32, #tpu.memory_space<vmem>>) attributes {dimension_semantics = [#tpu.dimension_semantics<parallel>], iteration_bounds = array<i64: 2>, scalar_prefetch = 0 : i64, scratch_operands = 0 : i64, tpu.core_type = #tpu.core_type<tc>, window_params = [{transform_indices = @transform_0, window_bounds = array<i64: 256, 128>}, {pipeline_mode = #tpu.pipeline_mode<synchronous>, transform_indices = @transform_1, window_bounds = array<i64: 8, 128>}, {pipeline_mode = #tpu.pipeline_mode<synchronous>, transform_indices = @transform_2, window_bounds = array<i64: 8, 128>}, {pipeline_mode = #tpu.pipeline_mode<synchronous>, transform_indices = @transform_3, window_bounds = array<i64: 8, 128>}, {transform_indices = @transform_4, window_bounds = array<i64: 256, 1024>}]} {
    %c0 = arith.constant 0 : index
    %c0_0 = arith.constant 0 : index
    %0 = vector.load %arg1[%c0, %c0_0] : memref<256x128xf32, #tpu.memory_space<vmem>>, vector<256x128xf32>
    %c0_1 = arith.constant 0 : index
    %c0_2 = arith.constant 0 : index
    %1 = vector.load %arg2[%c0_1, %c0_2] : memref<8x128xf32, #tpu.memory_space<vmem>>, vector<1x128xf32>
    %c0_3 = arith.constant 0 : index
    %c0_4 = arith.constant 0 : index
    %2 = vector.load %arg3[%c0_3, %c0_4] : memref<8x128xf32, #tpu.memory_space<vmem>>, vector<1x128xf32>
    %c0_5 = arith.constant 0 : index
    %c0_6 = arith.constant 0 : index
    %3 = vector.load %arg4[%c0_5, %c0_6] : memref<8x128xf32, #tpu.memory_space<vmem>>, vector<1x128xf32>
    %4 = vector.broadcast %1 : vector<1x128xf32> to vector<256x128xf32>
    %5 = arith.mulf %0, %4 : vector<256x128xf32>
    %6 = vector.broadcast %2 : vector<1x128xf32> to vector<256x128xf32>
    %7 = arith.subf %5, %6 : vector<256x128xf32>
    %8 = vector.broadcast %3 : vector<1x128xf32> to vector<256x128xf32>
    %9 = arith.mulf %8, %7 : vector<256x128xf32>
    %cst = arith.constant 0.000000e+00 : f32
    %10 = vector.broadcast %cst : f32 to vector<256x128xf32>
    %11 = arith.subf %10, %9 : vector<256x128xf32>
    %12 = math.exp %11 : vector<256x128xf32>
    %cst_7 = arith.constant 1.000000e+00 : f32
    %13 = vector.broadcast %cst_7 : f32 to vector<256x128xf32>
    %14 = arith.addf %13, %12 : vector<256x128xf32>
    %cst_8 = arith.constant 1.000000e+00 : f32
    %15 = vector.broadcast %cst_8 : f32 to vector<256x128xf32>
    %16 = arith.divf %15, %14 : vector<256x128xf32>
    %c0_9 = arith.constant 0 : index
    %c0_10 = arith.constant 0 : index
    %17 = vector.load %arg5[%c0_9, %c0_10] : memref<256x1024xf32, #tpu.memory_space<vmem>>, vector<256x128xf32>
    tpu.vector_store %arg5[%c0_9, %c0_10], %16 {strides = array<i32>} : memref<256x1024xf32, #tpu.memory_space<vmem>>, vector<256x128xf32>,
    %c1 = arith.constant 1 : index
    %c0_11 = arith.constant 0 : index
    %18 = vector.load %arg2[%c1, %c0_11] : memref<8x128xf32, #tpu.memory_space<vmem>>, vector<1x128xf32>
    %c1_12 = arith.constant 1 : index
    %c0_13 = arith.constant 0 : index
    %19 = vector.load %arg3[%c1_12, %c0_13] : memref<8x128xf32, #tpu.memory_space<vmem>>, vector<1x128xf32>
    %c1_14 = arith.constant 1 : index
    %c0_15 = arith.constant 0 : index
    %20 = vector.load %arg4[%c1_14, %c0_15] : memref<8x128xf32, #tpu.memory_space<vmem>>, vector<1x128xf32>
    %21 = vector.broadcast %18 : vector<1x128xf32> to vector<256x128xf32>
    %22 = arith.mulf %0, %21 : vector<256x128xf32>
    %23 = vector.broadcast %19 : vector<1x128xf32> to vector<256x128xf32>
    %24 = arith.subf %22, %23 : vector<256x128xf32>
    %25 = vector.broadcast %20 : vector<1x128xf32> to vector<256x128xf32>
    %26 = arith.mulf %25, %24 : vector<256x128xf32>
    %cst_16 = arith.constant 0.000000e+00 : f32
    %27 = vector.broadcast %cst_16 : f32 to vector<256x128xf32>
    %28 = arith.subf %27, %26 : vector<256x128xf32>
    %29 = math.exp %28 : vector<256x128xf32>
    %cst_17 = arith.constant 1.000000e+00 : f32
    %30 = vector.broadcast %cst_17 : f32 to vector<256x128xf32>
    %31 = arith.addf %30, %29 : vector<256x128xf32>
    %cst_18 = arith.constant 1.000000e+00 : f32
    %32 = vector.broadcast %cst_18 : f32 to vector<256x128xf32>
    %33 = arith.divf %32, %31 : vector<256x128xf32>
    %c0_19 = arith.constant 0 : index
    %c128 = arith.constant 128 : index
    %34 = vector.load %arg5[%c0_19, %c128] : memref<256x1024xf32, #tpu.memory_space<vmem>>, vector<256x128xf32>
    tpu.vector_store %arg5[%c0_19, %c128], %33 {strides = array<i32>} : memref<256x1024xf32, #tpu.memory_space<vmem>>, vector<256x128xf32>,
    %c2 = arith.constant 2 : index
    %c0_20 = arith.constant 0 : index
    %35 = vector.load %arg2[%c2, %c0_20] : memref<8x128xf32, #tpu.memory_space<vmem>>, vector<1x128xf32>
    %c2_21 = arith.constant 2 : index
    %c0_22 = arith.constant 0 : index
    %36 = vector.load %arg3[%c2_21, %c0_22] : memref<8x128xf32, #tpu.memory_space<vmem>>, vector<1x128xf32>
    %c2_23 = arith.constant 2 : index
    %c0_24 = arith.constant 0 : index
    %37 = vector.load %arg4[%c2_23, %c0_24] : memref<8x128xf32, #tpu.memory_space<vmem>>, vector<1x128xf32>
    %38 = vector.broadcast %35 : vector<1x128xf32> to vector<256x128xf32>
    %39 = arith.mulf %0, %38 : vector<256x128xf32>
    %40 = vector.broadcast %36 : vector<1x128xf32> to vector<256x128xf32>
    %41 = arith.subf %39, %40 : vector<256x128xf32>
    %42 = vector.broadcast %37 : vector<1x128xf32> to vector<256x128xf32>
    %43 = arith.mulf %42, %41 : vector<256x128xf32>
    %cst_25 = arith.constant 0.000000e+00 : f32
    %44 = vector.broadcast %cst_25 : f32 to vector<256x128xf32>
    %45 = arith.subf %44, %43 : vector<256x128xf32>
    %46 = math.exp %45 : vector<256x128xf32>
    %cst_26 = arith.constant 1.000000e+00 : f32
    %47 = vector.broadcast %cst_26 : f32 to vector<256x128xf32>
    %48 = arith.addf %47, %46 : vector<256x128xf32>
    %cst_27 = arith.constant 1.000000e+00 : f32
    %49 = vector.broadcast %cst_27 : f32 to vector<256x128xf32>
    %50 = arith.divf %49, %48 : vector<256x128xf32>
    %c0_28 = arith.constant 0 : index
    %c256 = arith.constant 256 : index
    %51 = vector.load %arg5[%c0_28, %c256] : memref<256x1024xf32, #tpu.memory_space<vmem>>, vector<256x128xf32>
    tpu.vector_store %arg5[%c0_28, %c256], %50 {strides = array<i32>} : memref<256x1024xf32, #tpu.memory_space<vmem>>, vector<256x128xf32>,
    %c3 = arith.constant 3 : index
    %c0_29 = arith.constant 0 : index
    %52 = vector.load %arg2[%c3, %c0_29] : memref<8x128xf32, #tpu.memory_space<vmem>>, vector<1x128xf32>
    %c3_30 = arith.constant 3 : index
    %c0_31 = arith.constant 0 : index
    %53 = vector.load %arg3[%c3_30, %c0_31] : memref<8x128xf32, #tpu.memory_space<vmem>>, vector<1x128xf32>
    %c3_32 = arith.constant 3 : index
    %c0_33 = arith.constant 0 : index
    %54 = vector.load %arg4[%c3_32, %c0_33] : memref<8x128xf32, #tpu.memory_space<vmem>>, vector<1x128xf32>
    %55 = vector.broadcast %52 : vector<1x128xf32> to vector<256x128xf32>
    %56 = arith.mulf %0, %55 : vector<256x128xf32>
    %57 = vector.broadcast %53 : vector<1x128xf32> to vector<256x128xf32>
    %58 = arith.subf %56, %57 : vector<256x128xf32>
    %59 = vector.broadcast %54 : vector<1x128xf32> to vector<256x128xf32>
    %60 = arith.mulf %59, %58 : vector<256x128xf32>
    %cst_34 = arith.constant 0.000000e+00 : f32
    %61 = vector.broadcast %cst_34 : f32 to vector<256x128xf32>
    %62 = arith.subf %61, %60 : vector<256x128xf32>
    %63 = math.exp %62 : vector<256x128xf32>
    %cst_35 = arith.constant 1.000000e+00 : f32
    %64 = vector.broadcast %cst_35 : f32 to vector<256x128xf32>
    %65 = arith.addf %64, %63 : vector<256x128xf32>
    %cst_36 = arith.constant 1.000000e+00 : f32
    %66 = vector.broadcast %cst_36 : f32 to vector<256x128xf32>
    %67 = arith.divf %66, %65 : vector<256x128xf32>
    %c0_37 = arith.constant 0 : index
    %c384 = arith.constant 384 : index
    %68 = vector.load %arg5[%c0_37, %c384] : memref<256x1024xf32, #tpu.memory_space<vmem>>, vector<256x128xf32>
    tpu.vector_store %arg5[%c0_37, %c384], %67 {strides = array<i32>} : memref<256x1024xf32, #tpu.memory_space<vmem>>, vector<256x128xf32>,
    %c4 = arith.constant 4 : index
    %c0_38 = arith.constant 0 : index
    %69 = vector.load %arg2[%c4, %c0_38] : memref<8x128xf32, #tpu.memory_space<vmem>>, vector<1x128xf32>
    %c4_39 = arith.constant 4 : index
    %c0_40 = arith.constant 0 : index
    %70 = vector.load %arg3[%c4_39, %c0_40] : memref<8x128xf32, #tpu.memory_space<vmem>>, vector<1x128xf32>
    %c4_41 = arith.constant 4 : index
    %c0_42 = arith.constant 0 : index
    %71 = vector.load %arg4[%c4_41, %c0_42] : memref<8x128xf32, #tpu.memory_space<vmem>>, vector<1x128xf32>
    %72 = vector.broadcast %69 : vector<1x128xf32> to vector<256x128xf32>
    %73 = arith.mulf %0, %72 : vector<256x128xf32>
    %74 = vector.broadcast %70 : vector<1x128xf32> to vector<256x128xf32>
    %75 = arith.subf %73, %74 : vector<256x128xf32>
    %76 = vector.broadcast %71 : vector<1x128xf32> to vector<256x128xf32>
    %77 = arith.mulf %76, %75 : vector<256x128xf32>
    %cst_43 = arith.constant 0.000000e+00 : f32
    %78 = vector.broadcast %cst_43 : f32 to vector<256x128xf32>
    %79 = arith.subf %78, %77 : vector<256x128xf32>
    %80 = math.exp %79 : vector<256x128xf32>
    %cst_44 = arith.constant 1.000000e+00 : f32
    %81 = vector.broadcast %cst_44 : f32 to vector<256x128xf32>
    %82 = arith.addf %81, %80 : vector<256x128xf32>
    %cst_45 = arith.constant 1.000000e+00 : f32
    %83 = vector.broadcast %cst_45 : f32 to vector<256x128xf32>
    %84 = arith.divf %83, %82 : vector<256x128xf32>
    %c0_46 = arith.constant 0 : index
    %c512 = arith.constant 512 : index
    %85 = vector.load %arg5[%c0_46, %c512] : memref<256x1024xf32, #tpu.memory_space<vmem>>, vector<256x128xf32>
    tpu.vector_store %arg5[%c0_46, %c512], %84 {strides = array<i32>} : memref<256x1024xf32, #tpu.memory_space<vmem>>, vector<256x128xf32>,
    %c5 = arith.constant 5 : index
    %c0_47 = arith.constant 0 : index
    %86 = vector.load %arg2[%c5, %c0_47] : memref<8x128xf32, #tpu.memory_space<vmem>>, vector<1x128xf32>
    %c5_48 = arith.constant 5 : index
    %c0_49 = arith.constant 0 : index
    %87 = vector.load %arg3[%c5_48, %c0_49] : memref<8x128xf32, #tpu.memory_space<vmem>>, vector<1x128xf32>
    %c5_50 = arith.constant 5 : index
    %c0_51 = arith.constant 0 : index
    %88 = vector.load %arg4[%c5_50, %c0_51] : memref<8x128xf32, #tpu.memory_space<vmem>>, vector<1x128xf32>
    %89 = vector.broadcast %86 : vector<1x128xf32> to vector<256x128xf32>
    %90 = arith.mulf %0, %89 : vector<256x128xf32>
    %91 = vector.broadcast %87 : vector<1x128xf32> to vector<256x128xf32>
    %92 = arith.subf %90, %91 : vector<256x128xf32>
    %93 = vector.broadcast %88 : vector<1x128xf32> to vector<256x128xf32>
    %94 = arith.mulf %93, %92 : vector<256x128xf32>
    %cst_52 = arith.constant 0.000000e+00 : f32
    %95 = vector.broadcast %cst_52 : f32 to vector<256x128xf32>
    %96 = arith.subf %95, %94 : vector<256x128xf32>
    %97 = math.exp %96 : vector<256x128xf32>
    %cst_53 = arith.constant 1.000000e+00 : f32
    %98 = vector.broadcast %cst_53 : f32 to vector<256x128xf32>
    %99 = arith.addf %98, %97 : vector<256x128xf32>
    %cst_54 = arith.constant 1.000000e+00 : f32
    %100 = vector.broadcast %cst_54 : f32 to vector<256x128xf32>
    %101 = arith.divf %100, %99 : vector<256x128xf32>
    %c0_55 = arith.constant 0 : index
    %c640 = arith.constant 640 : index
    %102 = vector.load %arg5[%c0_55, %c640] : memref<256x1024xf32, #tpu.memory_space<vmem>>, vector<256x128xf32>
    tpu.vector_store %arg5[%c0_55, %c640], %101 {strides = array<i32>} : memref<256x1024xf32, #tpu.memory_space<vmem>>, vector<256x128xf32>,
    %c6 = arith.constant 6 : index
    %c0_56 = arith.constant 0 : index
    %103 = vector.load %arg2[%c6, %c0_56] : memref<8x128xf32, #tpu.memory_space<vmem>>, vector<1x128xf32>
    %c6_57 = arith.constant 6 : index
    %c0_58 = arith.constant 0 : index
    %104 = vector.load %arg3[%c6_57, %c0_58] : memref<8x128xf32, #tpu.memory_space<vmem>>, vector<1x128xf32>
    %c6_59 = arith.constant 6 : index
    %c0_60 = arith.constant 0 : index
    %105 = vector.load %arg4[%c6_59, %c0_60] : memref<8x128xf32, #tpu.memory_space<vmem>>, vector<1x128xf32>
    %106 = vector.broadcast %103 : vector<1x128xf32> to vector<256x128xf32>
    %107 = arith.mulf %0, %106 : vector<256x128xf32>
    %108 = vector.broadcast %104 : vector<1x128xf32> to vector<256x128xf32>
    %109 = arith.subf %107, %108 : vector<256x128xf32>
    %110 = vector.broadcast %105 : vector<1x128xf32> to vector<256x128xf32>
    %111 = arith.mulf %110, %109 : vector<256x128xf32>
    %cst_61 = arith.constant 0.000000e+00 : f32
    %112 = vector.broadcast %cst_61 : f32 to vector<256x128xf32>
    %113 = arith.subf %112, %111 : vector<256x128xf32>
    %114 = math.exp %113 : vector<256x128xf32>
    %cst_62 = arith.constant 1.000000e+00 : f32
    %115 = vector.broadcast %cst_62 : f32 to vector<256x128xf32>
    %116 = arith.addf %115, %114 : vector<256x128xf32>
    %cst_63 = arith.constant 1.000000e+00 : f32
    %117 = vector.broadcast %cst_63 : f32 to vector<256x128xf32>
    %118 = arith.divf %117, %116 : vector<256x128xf32>
    %c0_64 = arith.constant 0 : index
    %c768 = arith.constant 768 : index
    %119 = vector.load %arg5[%c0_64, %c768] : memref<256x1024xf32, #tpu.memory_space<vmem>>, vector<256x128xf32>
    tpu.vector_store %arg5[%c0_64, %c768], %118 {strides = array<i32>} : memref<256x1024xf32, #tpu.memory_space<vmem>>, vector<256x128xf32>,
    %c7 = arith.constant 7 : index
    %c0_65 = arith.constant 0 : index
    %120 = vector.load %arg2[%c7, %c0_65] : memref<8x128xf32, #tpu.memory_space<vmem>>, vector<1x128xf32>
    %c7_66 = arith.constant 7 : index
    %c0_67 = arith.constant 0 : index
    %121 = vector.load %arg3[%c7_66, %c0_67] : memref<8x128xf32, #tpu.memory_space<vmem>>, vector<1x128xf32>
    %c7_68 = arith.constant 7 : index
    %c0_69 = arith.constant 0 : index
    %122 = vector.load %arg4[%c7_68, %c0_69] : memref<8x128xf32, #tpu.memory_space<vmem>>, vector<1x128xf32>
    %123 = vector.broadcast %120 : vector<1x128xf32> to vector<256x128xf32>
    %124 = arith.mulf %0, %123 : vector<256x128xf32>
    %125 = vector.broadcast %121 : vector<1x128xf32> to vector<256x128xf32>
    %126 = arith.subf %124, %125 : vector<256x128xf32>
    %127 = vector.broadcast %122 : vector<1x128xf32> to vector<256x128xf32>
    %128 = arith.mulf %127, %126 : vector<256x128xf32>
    %cst_70 = arith.constant 0.000000e+00 : f32
    %129 = vector.broadcast %cst_70 : f32 to vector<256x128xf32>
    %130 = arith.subf %129, %128 : vector<256x128xf32>
    %131 = math.exp %130 : vector<256x128xf32>
    %cst_71 = arith.constant 1.000000e+00 : f32
    %132 = vector.broadcast %cst_71 : f32 to vector<256x128xf32>
    %133 = arith.addf %132, %131 : vector<256x128xf32>
    %cst_72 = arith.constant 1.000000e+00 : f32
    %134 = vector.broadcast %cst_72 : f32 to vector<256x128xf32>
    %135 = arith.divf %134, %133 : vector<256x128xf32>
    %c0_73 = arith.constant 0 : index
    %c896 = arith.constant 896 : index
    %136 = vector.load %arg5[%c0_73, %c896] : memref<256x1024xf32, #tpu.memory_space<vmem>>, vector<256x128xf32>
    tpu.vector_store %arg5[%c0_73, %c896], %135 {strides = array<i32>} : memref<256x1024xf32, #tpu.memory_space<vmem>>, vector<256x128xf32>,
    return
  }
  func.func @transform_0(%arg0: i32) -> (i32, i32) {
    %c0_i32 = arith.constant 0 : i32
    %c0_i32_0 = arith.constant 0 : i32
    return %arg0, %c0_i32 : i32, i32
  }
  func.func @transform_1(%arg0: i32) -> (i32, i32) {
    %c0_i32 = arith.constant 0 : i32
    %c0_i32_0 = arith.constant 0 : i32
    %c0_i32_1 = arith.constant 0 : i32
    return %c0_i32, %c0_i32_0 : i32, i32
  }
  func.func @transform_2(%arg0: i32) -> (i32, i32) {
    %c0_i32 = arith.constant 0 : i32
    %c0_i32_0 = arith.constant 0 : i32
    %c0_i32_1 = arith.constant 0 : i32
    return %c0_i32, %c0_i32_0 : i32, i32
  }
  func.func @transform_3(%arg0: i32) -> (i32, i32) {
    %c0_i32 = arith.constant 0 : i32
    %c0_i32_0 = arith.constant 0 : i32
    %c0_i32_1 = arith.constant 0 : i32
    return %c0_i32, %c0_i32_0 : i32, i32
  }
  func.func @transform_4(%arg0: i32) -> (i32, i32) {
    %c0_i32 = arith.constant 0 : i32
    %c0_i32_0 = arith.constant 0 : i32
    return %arg0, %c0_i32 : i32, i32
  }
}

</mosaic_0001>

<llo_original>
// kernel: tpu_custom_call.1
$region0: #{tpu_custom_call.1}
  #allocation0 [shape = 'u32[]', space=smem, size = 0x4, offset = 0x4, fixed_abs, tag = 'smem constant byte address 0x4 - core index']
  #allocation1 [shape = 'u32[144,128]{1,0:T(1,128)}', space=vmem, size = 0x12000, scoped, tag = 'internal scratch']
  %s0 = inlined_call_operand.hbm [shape: f32[512,128], index: 0, kind: input, shape index: {}]
  %s1 = inlined_call_operand.hbm [shape: f32[8,128], index: 1, kind: input, shape index: {}]
  %s2 = inlined_call_operand.hbm [shape: f32[8,128], index: 2, kind: input, shape index: {}]
  %s3 = inlined_call_operand.hbm [shape: f32[8,128], index: 3, kind: input, shape index: {}]
  %s4 = inlined_call_operand.hbm [shape: f32[512,1024], index: 4, kind: output, shape index: {}]
  %s5 = sld [smem:[#allocation0]]
  $region65: #{tpu_custom_call.1} parent=0
    _
  %s7 = ssub.s32 1, %s5
  %s8 = scalar_select 0, %s7, %s5
  $region1: #{tpu_custom_call.1} parent=0
    #allocation2 [shape = 'u8[262144]{0}', space=vmem, size = 0x40000, scoped, tag = 'input window, operand 0']
    #allocation3 [shape = 's32[2]{0}', space=sflag, size = 0x8, scoped, tag = 'scoped memory for tpu_custom_call.1']
    #allocation4 [shape = 's32[2]{0}', space=sflag, size = 0x8, scoped, tag = 'scoped memory for tpu_custom_call.1']
    #allocation5 [shape = 'u8[4096]{0}', space=vmem, size = 0x1000, scoped, tag = 'input window, operand 1, single buffered']
    #allocation6 [shape = 's32[1]{0}', space=sflag, size = 0x4, scoped, tag = 'scoped memory for tpu_custom_call.1']
    #allocation7 [shape = 'u8[4096]{0}', space=vmem, size = 0x1000, scoped, tag = 'input window, operand 2, single buffered']
    #allocation8 [shape = 'u8[4096]{0}', space=vmem, size = 0x1000, scoped, tag = 'input window, operand 3, single buffered']
    #allocation9 [shape = 's32[1]{0}', space=sflag, size = 0x4, scoped, tag = 'scoped memory for tpu_custom_call.1']
    #allocation10 [shape = 'u8[2097152]{0}', space=vmem, size = 0x200000, scoped, tag = 'output window, operand 0']
    %9 = vsyncpa [#allocation3], 0
    %s10 = scalar_lea.sflag [#allocation3], 1
    %11 = vsyncpa %s10, 0
    %12 = vsyncpa [#allocation6], 0
    %13 = vsyncpa [#allocation9], 0
    %14 = vsyncpa [#allocation4], 0
    %s15 = scalar_lea.sflag [#allocation4], 1
    %16 = vsyncpa %s15, 0
    loop: start=0, step=1, limit=4
    $region2: #{tpu_custom_call.1} parent=1 // loop_pre_header
      _
    $region3: #{tpu_custom_call.1} parent=1 // loop_header
      %s18 = sphi 0, %s22
      %p19 = scmp.ge.s32.totalorder %s18, 4
      %s28 = sphi 0, %s30
      %s31 = sphi 0, %s28
      %s32 = sphi 0, %s31
      %s48 = sphi 0, %s32
      %s52 = sphi 0, %s52
      %s54 = sphi 0, %s52
      %s55 = sphi 0, %s54
      %s69 = sphi 0, %s55
      %s73 = sphi 0, %s73
      %s75 = sphi 0, %s73
      %s76 = sphi 0, %s75
      %s90 = sphi 0, %s76
      %s94 = sphi 0, %s94
      %s96 = sphi 0, %s94
      %s97 = sphi 0, %s96
      %s111 = sphi 0, %s97
      %s117 = sphi 0, %s119
      %s120 = sphi 0, %s117
      %s121 = sphi 0, %s120
      %s137 = sphi 0, %s121
    $region4: #{tpu_custom_call.1} parent=1 // loop_header_branch
      %21 = sbr.rel (%p19) target = $region8
    $region5: #{tpu_custom_call.1} parent=1 // loop_body
      %s23 = ssub.s32 %s18, 1
      %s24 = ssub.s32 %s18, 2
      %s25 = sadd.s32 %s18, 1
      %s26 = ssub.s32 %s18, %s25
      %p27 = scmp.eq.s32.totalorder %s26, 0
      %s29 = sadd.s32 %s28, 1
      %s30 = scalar_select %p27, %s28, %s29
      %p33 = pneg %p27
      %p34 = scmp.eq.s32.totalorder %s18, 1
      %p35 = por %p33, %p34
      %p36 = scmp.ne.s32.totalorder %s28, %s31
      %p37 = scmp.eq.s32.totalorder %s18, 0
      %p38 = por %p36, %p37
      %p39 = scmp.ne.s32.totalorder %s28, %s31
      %p40 = scmp.eq.s32.totalorder %s23, 1
      %p41 = por %p39, %p40
      %p42 = scmp.ne.s32.totalorder %s31, %s32
      %p43 = scmp.eq.s32.totalorder %s23, 0
      %p44 = por %p42, %p43
      %p45 = scmp.ne.s32.totalorder %s31, %s32
      %p46 = scmp.eq.s32.totalorder %s24, 1
      %p47 = por %p45, %p46
      %p49 = scmp.ne.s32.totalorder %s32, %s48
      %p50 = scmp.eq.s32.totalorder %s24, 0
      %p51 = por %p49, %p50
      %s53 = sadd.s32 %s52, 1
      %p56 = scmp.eq.s32.totalorder %s18, 1
      %p57 = scmp.ne.s32.totalorder %s52, %s54
      %p58 = scmp.eq.s32.totalorder %s18, 0
      %p59 = por %p57, %p58
      %p60 = scmp.ne.s32.totalorder %s52, %s54
      %p61 = scmp.eq.s32.totalorder %s23, 1
      %p62 = por %p60, %p61
      %p63 = scmp.ne.s32.totalorder %s54, %s55
      %p64 = scmp.eq.s32.totalorder %s23, 0
      %p65 = por %p63, %p64
      %p66 = scmp.ne.s32.totalorder %s54, %s55
      %p67 = scmp.eq.s32.totalorder %s24, 1
      %p68 = por %p66, %p67
      %p70 = scmp.ne.s32.totalorder %s55, %s69
      %p71 = scmp.eq.s32.totalorder %s24, 0
      %p72 = por %p70, %p71
      %s74 = sadd.s32 %s73, 1
      %p77 = scmp.eq.s32.totalorder %s18, 1
      %p78 = scmp.ne.s32.totalorder %s73, %s75
      %p79 = scmp.eq.s32.totalorder %s18, 0
      %p80 = por %p78, %p79
      %p81 = scmp.ne.s32.totalorder %s73, %s75
      %p82 = scmp.eq.s32.totalorder %s23, 1
      %p83 = por %p81, %p82
      %p84 = scmp.ne.s32.totalorder %s75, %s76
      %p85 = scmp.eq.s32.totalorder %s23, 0
      %p86 = por %p84, %p85
      %p87 = scmp.ne.s32.totalorder %s75, %s76
      %p88 = scmp.eq.s32.totalorder %s24, 1
      %p89 = por %p87, %p88
      %p91 = scmp.ne.s32.totalorder %s76, %s90
      %p92 = scmp.eq.s32.totalorder %s24, 0
      %p93 = por %p91, %p92
      %s95 = sadd.s32 %s94, 1
      %p98 = scmp.eq.s32.totalorder %s18, 1
      %p99 = scmp.ne.s32.totalorder %s94, %s96
      %p100 = scmp.eq.s32.totalorder %s18, 0
      %p101 = por %p99, %p100
      %p102 = scmp.ne.s32.totalorder %s94, %s96
      %p103 = scmp.eq.s32.totalorder %s23, 1
      %p104 = por %p102, %p103
      %p105 = scmp.ne.s32.totalorder %s96, %s97
      %p106 = scmp.eq.s32.totalorder %s23, 0
      %p107 = por %p105, %p106
      %p108 = scmp.ne.s32.totalorder %s96, %s97
      %p109 = scmp.eq.s32.totalorder %s24, 1
      %p110 = por %p108, %p109
      %p112 = scmp.ne.s32.totalorder %s97, %s111
      %p113 = scmp.eq.s32.totalorder %s24, 0
      %p114 = por %p112, %p113
      %s115 = ssub.s32 %s18, %s25
      %p116 = scmp.eq.s32.totalorder %s115, 0
      %s118 = sadd.s32 %s117, 1
      %s119 = scalar_select %p116, %s117, %s118
      %p122 = pneg %p116
      %p123 = scmp.eq.s32.totalorder %s18, 1
      %p124 = por %p122, %p123
      %p125 = scmp.ne.s32.totalorder %s117, %s120
      %p126 = scmp.eq.s32.totalorder %s18, 0
      %p127 = por %p125, %p126
      %p128 = scmp.ne.s32.totalorder %s117, %s120
      %p129 = scmp.eq.s32.totalorder %s23, 1
      %p130 = por %p128, %p129
      %p131 = scmp.ne.s32.totalorder %s120, %s121
      %p132 = scmp.eq.s32.totalorder %s23, 0
      %p133 = por %p131, %p132
      %p134 = scmp.ne.s32.totalorder %s120, %s121
      %p135 = scmp.eq.s32.totalorder %s24, 1
      %p136 = por %p134, %p135
      %p138 = scmp.ne.s32.totalorder %s121, %s137
      %p139 = scmp.eq.s32.totalorder %s24, 0
      %p140 = por %p138, %p139
      %p141 = scmp.le.s32.totalorder 1, %s18
      %p142 = scmp.lt.s32.totalorder %s18, 3
      %p143 = pnand %p141, %p142
      %p144 = pneg %p143
      // Predicated region
      $region9: #{tpu_custom_call.1} parent=5 // pred_check
        _
      $region10: #{tpu_custom_call.1} parent=5 // pred_check_branch
        %146 = sbr.rel (%p143) target = $region12
      $region11: #{tpu_custom_call.1} parent=5 // pred_region
        %s147 = ssub.s32 %s18, 1
        // Predicated region
        $region13: #{tpu_custom_call.1} parent=11 // pred_check
          %p148 = pneg %p65
        $region14: #{tpu_custom_call.1} parent=11 // pred_check_branch
          %150 = sbr.rel (%p148) target = $region16
        $region15: #{tpu_custom_call.1} parent=11 // pred_region
          %s152 = ssub.s32 128, 128
          %153 = vsyncadd [#allocation6], %s152
          %s155 = sshll.u32 [#allocation5], 4
          %s156 = int_to_ptr.vmem [resolvable:$true] %s155
          %158 = dma.hbm_to_vmem [thread:$0]  %s1, 128, %s156, [#allocation6]
        $region16: #{tpu_custom_call.1} parent=11 // pred_fallthru
          _
        // Predicated region
        $region17: #{tpu_custom_call.1} parent=11 // pred_check
          %p159 = pneg %p86
        $region18: #{tpu_custom_call.1} parent=11 // pred_check_branch
          %161 = sbr.rel (%p159) target = $region20
        $region19: #{tpu_custom_call.1} parent=11 // pred_region
          %s163 = ssub.s32 128, 128
          %164 = vsyncadd [#allocation6], %s163
          %s166 = sshll.u32 [#allocation7], 4
          %s167 = int_to_ptr.vmem [resolvable:$true] %s166
          %169 = dma.hbm_to_vmem [thread:$0]  %s2, 128, %s167, [#allocation6]
        $region20: #{tpu_custom_call.1} parent=11 // pred_fallthru
          _
        // Predicated region
        $region21: #{tpu_custom_call.1} parent=11 // pred_check
          %p170 = pneg %p107
        $region22: #{tpu_custom_call.1} parent=11 // pred_check_branch
          %172 = sbr.rel (%p170) target = $region24
        $region23: #{tpu_custom_call.1} parent=11 // pred_region
          %s174 = ssub.s32 128, 128
          %175 = vsyncadd [#allocation9], %s174
          %s177 = sshll.u32 [#allocation8], 4
          %s178 = int_to_ptr.vmem [resolvable:$true] %s177
          %180 = dma.hbm_to_vmem [thread:$0]  %s3, 128, %s178, [#allocation9]
        $region24: #{tpu_custom_call.1} parent=11 // pred_fallthru
          _
      $region12: #{tpu_custom_call.1} parent=5 // pred_fallthru
        _
      %p181 = scmp.lt.s32.totalorder %s18, 2
      // Predicated region
      $region25: #{tpu_custom_call.1} parent=5 // pred_check
        %p182 = pneg %p181
      $region26: #{tpu_custom_call.1} parent=5 // pred_check_branch
        %184 = sbr.rel (%p182) target = $region28
      $region27: #{tpu_custom_call.1} parent=5 // pred_region
        // Predicated region
        $region29: #{tpu_custom_call.1} parent=27 // pred_check
          %p185 = pneg %p38
        $region30: #{tpu_custom_call.1} parent=27 // pred_check_branch
          %187 = sbr.rel (%p185) target = $region32
        $region31: #{tpu_custom_call.1} parent=27 // pred_region
          %s188 = sand.u32 %s28, 1
          %s189 = scalar_lea.sflag [#allocation3], %s188
          %s190 = sand.u32 %s28, 1
          %s191 = smul.addr %s190, 256
          %s192 = scalar_lea.vmem [#allocation2], %s191
          %s193 = smul.u32 32, %s18
          %s195 = ssub.s32 4096, 4096
          %196 = vsyncadd %s189, %s195
          %s197 = smul.addr %s193, 128
          %s198 = scalar_lea.hbm %s0, %s197
          %s199 = sshll.u32 %s192, 4
          %s200 = int_to_ptr.vmem [resolvable:$true] %s199
          %205 = dma.hbm_to_vmem [thread:$0]  %s198, 4096, %s200, %s189, 128, 128, 8
        $region32: #{tpu_custom_call.1} parent=27 // pred_fallthru
          _
      $region28: #{tpu_custom_call.1} parent=5 // pred_fallthru
        _
      %p206 = scmp.le.s32.totalorder 1, %s18
      %p207 = scmp.lt.s32.totalorder %s18, 3
      %p208 = pnand %p206, %p207
      %p209 = pneg %p208
      // Predicated region
      $region33: #{tpu_custom_call.1} parent=5 // pred_check
        _
      $region34: #{tpu_custom_call.1} parent=5 // pred_check_branch
        %211 = sbr.rel (%p208) target = $region36
      $region35: #{tpu_custom_call.1} parent=5 // pred_region
        %s212 = ssub.s32 %s18, 1
        %s213 = sand.u32 %s31, 1
        %s214 = scalar_lea.sflag [#allocation3], %s213
        %s215 = sand.u32 %s31, 1
        %s216 = smul.addr %s215, 256
        %s217 = scalar_lea.vmem [#allocation2], %s216
        // Predicated region
        $region37: #{tpu_custom_call.1} parent=35 // pred_check
          %p218 = pneg %p44
        $region38: #{tpu_custom_call.1} parent=35 // pred_check_branch
          %220 = sbr.rel (%p218) target = $region40
        $region39: #{tpu_custom_call.1} parent=35 // pred_region
          %221 = dma.done %s214, 4096
        $region40: #{tpu_custom_call.1} parent=35 // pred_fallthru
          _
        // Predicated region
        $region41: #{tpu_custom_call.1} parent=35 // pred_check
          %p222 = pneg %p65
        $region42: #{tpu_custom_call.1} parent=35 // pred_check_branch
          %224 = sbr.rel (%p222) target = $region44
        $region43: #{tpu_custom_call.1} parent=35 // pred_region
          %225 = dma.done [#allocation6], 128
        $region44: #{tpu_custom_call.1} parent=35 // pred_fallthru
          _
        // Predicated region
        $region45: #{tpu_custom_call.1} parent=35 // pred_check
          %p226 = pneg %p86
        $region46: #{tpu_custom_call.1} parent=35 // pred_check_branch
          %228 = sbr.rel (%p226) target = $region48
        $region47: #{tpu_custom_call.1} parent=35 // pred_region
          %229 = dma.done [#allocation6], 128
        $region48: #{tpu_custom_call.1} parent=35 // pred_fallthru
          _
        // Predicated region
        $region49: #{tpu_custom_call.1} parent=35 // pred_check
          %p230 = pneg %p107
        $region50: #{tpu_custom_call.1} parent=35 // pred_check_branch
          %232 = sbr.rel (%p230) target = $region52
        $region51: #{tpu_custom_call.1} parent=35 // pred_region
          %233 = dma.done [#allocation9], 128
        $region52: #{tpu_custom_call.1} parent=35 // pred_fallthru
          _
        %s234 = sand.u32 %s31, 1
        %s235 = scalar_lea.sflag [#allocation3], %s234
        %s236 = sand.u32 %s31, 1
        %s237 = smul.addr %s236, 256
        %s238 = scalar_lea.vmem [#allocation2], %s237
        %p239 = pneg %p44
        %p240 = pneg %p41
        %p241 = pneg %p65
        %p242 = pneg %p62
        %p243 = pneg %p86
        %p244 = pneg %p83
        %p245 = pneg %p107
        %p246 = pneg %p104
        %p247 = pneg %p133
        %p248 = pneg %p130
        %s249 = sand.u32 %s120, 1
        %s250 = scalar_lea.sflag [#allocation4], %s249
        %s251 = sand.u32 %s120, 1
        %s252 = smul.addr %s251, 2048
        %s253 = scalar_lea.vmem [#allocation10], %s252
        %s254 = smul.u32 32, %s23
        %s255 = smul.u32 32, %s23
        %v256 = vld [vmem:[%s217] sm:$0xff]
        %v257 = vld [vmem:[%s217 + $0x8] sm:$0xff]
        %v258 = vld [vmem:[%s217 + $0x10] sm:$0xff]
        %v259 = vld [vmem:[%s217 + $0x18] sm:$0xff]
        %v260 = vld [vmem:[%s217 + $0x20] sm:$0xff]
        %v261 = vld [vmem:[%s217 + $0x28] sm:$0xff]
        %v262 = vld [vmem:[%s217 + $0x30] sm:$0xff]
        %v263 = vld [vmem:[%s217 + $0x38] sm:$0xff]
        %v264 = vld [vmem:[%s217 + $0x40] sm:$0xff]
        %v265 = vld [vmem:[%s217 + $0x48] sm:$0xff]
        %v266 = vld [vmem:[%s217 + $0x50] sm:$0xff]
        %v267 = vld [vmem:[%s217 + $0x58] sm:$0xff]
        %v268 = vld [vmem:[%s217 + $0x60] sm:$0xff]
        %v269 = vld [vmem:[%s217 + $0x68] sm:$0xff]
        %v270 = vld [vmem:[%s217 + $0x70] sm:$0xff]
        %v271 = vld [vmem:[%s217 + $0x78] sm:$0xff]
        %v272 = vld [vmem:[%s217 + $0x80] sm:$0xff]
        %v273 = vld [vmem:[%s217 + $0x88] sm:$0xff]
        %v274 = vld [vmem:[%s217 + $0x90] sm:$0xff]
        %v275 = vld [vmem:[%s217 + $0x98] sm:$0xff]
        %v276 = vld [vmem:[%s217 + $0xa0] sm:$0xff]
        %v277 = vld [vmem:[%s217 + $0xa8] sm:$0xff]
        %v278 = vld [vmem:[%s217 + $0xb0] sm:$0xff]
        %v279 = vld [vmem:[%s217 + $0xb8] sm:$0xff]
        %v280 = vld [vmem:[%s217 + $0xc0] sm:$0xff]
        %v281 = vld [vmem:[%s217 + $0xc8] sm:$0xff]
        %v282 = vld [vmem:[%s217 + $0xd0] sm:$0xff]
        %v283 = vld [vmem:[%s217 + $0xd8] sm:$0xff]
        %v284 = vld [vmem:[%s217 + $0xe0] sm:$0xff]
        %v285 = vld [vmem:[%s217 + $0xe8] sm:$0xff]
        %v286 = vld [vmem:[%s217 + $0xf0] sm:$0xff]
        %v287 = vld [vmem:[%s217 + $0xf8] sm:$0xff]
        %v288 = vld [vmem:[#allocation5] sm:$0x1]
        %v289 = vld [vmem:[#allocation7] sm:$0x1]
        %v290 = vld [vmem:[#allocation8] sm:$0x1]
        %v291 = vlaneseq
        %v292 = vshrl.u32 %v291, 7
        %v293 = vsub.s32 0, %v292
        %v294 = vrot.slane %v288, %v293
        %v295 = vmul.f32 %v256, %v294
        %v296 = vmul.f32 %v257, %v294
        %v297 = vmul.f32 %v258, %v294
        %v298 = vmul.f32 %v259, %v294
        %v299 = vmul.f32 %v260, %v294
        %v300 = vmul.f32 %v261, %v294
        %v301 = vmul.f32 %v262, %v294
        %v302 = vmul.f32 %v263, %v294
        %v303 = vmul.f32 %v264, %v294
        %v304 = vmul.f32 %v265, %v294
        %v305 = vmul.f32 %v266, %v294
        %v306 = vmul.f32 %v267, %v294
        %v307 = vmul.f32 %v268, %v294
        %v308 = vmul.f32 %v269, %v294
        %v309 = vmul.f32 %v270, %v294
        %v310 = vmul.f32 %v271, %v294
        %v311 = vmul.f32 %v272, %v294
        %v312 = vmul.f32 %v273, %v294
        %v313 = vmul.f32 %v274, %v294
        %v314 = vmul.f32 %v275, %v294
        %v315 = vmul.f32 %v276, %v294
        %v316 = vmul.f32 %v277, %v294
        %v317 = vmul.f32 %v278, %v294
        %v318 = vmul.f32 %v279, %v294
        %v319 = vmul.f32 %v280, %v294
        %v320 = vmul.f32 %v281, %v294
        %v321 = vmul.f32 %v282, %v294
        %v322 = vmul.f32 %v283, %v294
        %v323 = vmul.f32 %v284, %v294
        %v324 = vmul.f32 %v285, %v294
        %v325 = vmul.f32 %v286, %v294
        %v326 = vmul.f32 %v287, %v294
        %v327 = vlaneseq
        %v328 = vshrl.u32 %v327, 7
        %v329 = vsub.s32 0, %v328
        %v330 = vrot.slane %v289, %v329
        %v331 = vsub.f32 %v295, %v330
        %v332 = vsub.f32 %v296, %v330
        %v333 = vsub.f32 %v297, %v330
        %v334 = vsub.f32 %v298, %v330
        %v335 = vsub.f32 %v299, %v330
        %v336 = vsub.f32 %v300, %v330
        %v337 = vsub.f32 %v301, %v330
        %v338 = vsub.f32 %v302, %v330
        %v339 = vsub.f32 %v303, %v330
        %v340 = vsub.f32 %v304, %v330
        %v341 = vsub.f32 %v305, %v330
        %v342 = vsub.f32 %v306, %v330
        %v343 = vsub.f32 %v307, %v330
        %v344 = vsub.f32 %v308, %v330
        %v345 = vsub.f32 %v309, %v330
        %v346 = vsub.f32 %v310, %v330
        %v347 = vsub.f32 %v311, %v330
        %v348 = vsub.f32 %v312, %v330
        %v349 = vsub.f32 %v313, %v330
        %v350 = vsub.f32 %v314, %v330
        %v351 = vsub.f32 %v315, %v330
        %v352 = vsub.f32 %v316, %v330
        %v353 = vsub.f32 %v317, %v330
        %v354 = vsub.f32 %v318, %v330
        %v355 = vsub.f32 %v319, %v330
        %v356 = vsub.f32 %v320, %v330
        %v357 = vsub.f32 %v321, %v330
        %v358 = vsub.f32 %v322, %v330
        %v359 = vsub.f32 %v323, %v330
        %v360 = vsub.f32 %v324, %v330
        %v361 = vsub.f32 %v325, %v330
        %v362 = vsub.f32 %v326, %v330
        %v363 = vlaneseq
        %v364 = vshrl.u32 %v363, 7
        %v365 = vsub.s32 0, %v364
        %v366 = vrot.slane %v290, %v365
        %v367 = vmul.f32 %v366, %v331
        %v368 = vmul.f32 %v366, %v332
        %v369 = vmul.f32 %v366, %v333
        %v370 = vmul.f32 %v366, %v334
        %v371 = vmul.f32 %v366, %v335
        %v372 = vmul.f32 %v366, %v336
        %v373 = vmul.f32 %v366, %v337
        %v374 = vmul.f32 %v366, %v338
        %v375 = vmul.f32 %v366, %v339
        %v376 = vmul.f32 %v366, %v340
        %v377 = vmul.f32 %v366, %v341
        %v378 = vmul.f32 %v366, %v342
        %v379 = vmul.f32 %v366, %v343
        %v380 = vmul.f32 %v366, %v344
        %v381 = vmul.f32 %v366, %v345
        %v382 = vmul.f32 %v366, %v346
        %v383 = vmul.f32 %v366, %v347
        %v384 = vmul.f32 %v366, %v348
        %v385 = vmul.f32 %v366, %v349
        %v386 = vmul.f32 %v366, %v350
        %v387 = vmul.f32 %v366, %v351
        %v388 = vmul.f32 %v366, %v352
        %v389 = vmul.f32 %v366, %v353
        %v390 = vmul.f32 %v366, %v354
        %v391 = vmul.f32 %v366, %v355
        %v392 = vmul.f32 %v366, %v356
        %v393 = vmul.f32 %v366, %v357
        %v394 = vmul.f32 %v366, %v358
        %v395 = vmul.f32 %v366, %v359
        %v396 = vmul.f32 %v366, %v360
        %v397 = vmul.f32 %v366, %v361
        %v398 = vmul.f32 %v366, %v362
        %v399 = vsub.f32 0.0, %v367
        %v400 = vsub.f32 0.0, %v368
        %v401 = vsub.f32 0.0, %v369
        %v402 = vsub.f32 0.0, %v370
        %v403 = vsub.f32 0.0, %v371
        %v404 = vsub.f32 0.0, %v372
        %v405 = vsub.f32 0.0, %v373
        %v406 = vsub.f32 0.0, %v374
        %v407 = vsub.f32 0.0, %v375
        %v408 = vsub.f32 0.0, %v376
        %v409 = vsub.f32 0.0, %v377
        %v410 = vsub.f32 0.0, %v378
        %v411 = vsub.f32 0.0, %v379
        %v412 = vsub.f32 0.0, %v380
        %v413 = vsub.f32 0.0, %v381
        %v414 = vsub.f32 0.0, %v382
        %v415 = vsub.f32 0.0, %v383
        %v416 = vsub.f32 0.0, %v384
        %v417 = vsub.f32 0.0, %v385
        %v418 = vsub.f32 0.0, %v386
        %v419 = vsub.f32 0.0, %v387
        %v420 = vsub.f32 0.0, %v388
        %v421 = vsub.f32 0.0, %v389
        %v422 = vsub.f32 0.0, %v390
        %v423 = vsub.f32 0.0, %v391
        %v424 = vsub.f32 0.0, %v392
        %v425 = vsub.f32 0.0, %v393
        %v426 = vsub.f32 0.0, %v394
        %v427 = vsub.f32 0.0, %v395
        %v428 = vsub.f32 0.0, %v396
        %v429 = vsub.f32 0.0, %v397
        %v430 = vsub.f32 0.0, %v398
        %v431 = vmul.f32 %v399, 1.442695
        %v432 = vpow.pop %v431
        %v433 = vmul.f32 %v400, 1.442695
        %v434 = vpow.pop %v433
        %v435 = vmul.f32 %v401, 1.442695
        %v436 = vpow.pop %v435
        %v437 = vmul.f32 %v402, 1.442695
        %v438 = vpow.pop %v437
        %v439 = vmul.f32 %v403, 1.442695
        %v440 = vpow.pop %v439
        %v441 = vmul.f32 %v404, 1.442695
        %v442 = vpow.pop %v441
        %v443 = vmul.f32 %v405, 1.442695
        %v444 = vpow.pop %v443
        %v445 = vmul.f32 %v406, 1.442695
        %v446 = vpow.pop %v445
        %v447 = vmul.f32 %v407, 1.442695
        %v448 = vpow.pop %v447
        %v449 = vmul.f32 %v408, 1.442695
        %v450 = vpow.pop %v449
        %v451 = vmul.f32 %v409, 1.442695
        %v452 = vpow.pop %v451
        %v453 = vmul.f32 %v410, 1.442695
        %v454 = vpow.pop %v453
        %v455 = vmul.f32 %v411, 1.442695
        %v456 = vpow.pop %v455
        %v457 = vmul.f32 %v412, 1.442695
        %v458 = vpow.pop %v457
        %v459 = vmul.f32 %v413, 1.442695
        %v460 = vpow.pop %v459
        %v461 = vmul.f32 %v414, 1.442695
        %v462 = vpow.pop %v461
        %v463 = vmul.f32 %v415, 1.442695
        %v464 = vpow.pop %v463
        %v465 = vmul.f32 %v416, 1.442695
        %v466 = vpow.pop %v465
        %v467 = vmul.f32 %v417, 1.442695
        %v468 = vpow.pop %v467
        %v469 = vmul.f32 %v418, 1.442695
        %v470 = vpow.pop %v469
        %v471 = vmul.f32 %v419, 1.442695
        %v472 = vpow.pop %v471
        %v473 = vmul.f32 %v420, 1.442695
        %v474 = vpow.pop %v473
        %v475 = vmul.f32 %v421, 1.442695
        %v476 = vpow.pop %v475
        %v477 = vmul.f32 %v422, 1.442695
        %v478 = vpow.pop %v477
        %v479 = vmul.f32 %v423, 1.442695
        %v480 = vpow.pop %v479
        %v481 = vmul.f32 %v424, 1.442695
        %v482 = vpow.pop %v481
        %v483 = vmul.f32 %v425, 1.442695
        %v484 = vpow.pop %v483
        %v485 = vmul.f32 %v426, 1.442695
        %v486 = vpow.pop %v485
        %v487 = vmul.f32 %v427, 1.442695
        %v488 = vpow.pop %v487
        %v489 = vmul.f32 %v428, 1.442695
        %v490 = vpow.pop %v489
        %v491 = vmul.f32 %v429, 1.442695
        %v492 = vpow.pop %v491
        %v493 = vmul.f32 %v430, 1.442695
        %v494 = vpow.pop %v493
        %v495 = vadd.f32 %v432, 1.0
        %v496 = vadd.f32 %v434, 1.0
        %v497 = vadd.f32 %v436, 1.0
        %v498 = vadd.f32 %v438, 1.0
        %v499 = vadd.f32 %v440, 1.0
        %v500 = vadd.f32 %v442, 1.0
        %v501 = vadd.f32 %v444, 1.0
        %v502 = vadd.f32 %v446, 1.0
        %v503 = vadd.f32 %v448, 1.0
        %v504 = vadd.f32 %v450, 1.0
        %v505 = vadd.f32 %v452, 1.0
        %v506 = vadd.f32 %v454, 1.0
        %v507 = vadd.f32 %v456, 1.0
        %v508 = vadd.f32 %v458, 1.0
        %v509 = vadd.f32 %v460, 1.0
        %v510 = vadd.f32 %v462, 1.0
        %v511 = vadd.f32 %v464, 1.0
        %v512 = vadd.f32 %v466, 1.0
        %v513 = vadd.f32 %v468, 1.0
        %v514 = vadd.f32 %v470, 1.0
        %v515 = vadd.f32 %v472, 1.0
        %v516 = vadd.f32 %v474, 1.0
        %v517 = vadd.f32 %v476, 1.0
        %v518 = vadd.f32 %v478, 1.0
        %v519 = vadd.f32 %v480, 1.0
        %v520 = vadd.f32 %v482, 1.0
        %v521 = vadd.f32 %v484, 1.0
        %v522 = vadd.f32 %v486, 1.0
        %v523 = vadd.f32 %v488, 1.0
        %v524 = vadd.f32 %v490, 1.0
        %v525 = vadd.f32 %v492, 1.0
        %v526 = vadd.f32 %v494, 1.0
        %v527 = vrcp.pop %v495
        %v528 = vmul.f32 1.0, %v527
        %v529 = vrcp.pop %v496
        %v530 = vmul.f32 1.0, %v529
        %v531 = vrcp.pop %v497
        %v532 = vmul.f32 1.0, %v531
        %v533 = vrcp.pop %v498
        %v534 = vmul.f32 1.0, %v533
        %v535 = vrcp.pop %v499
        %v536 = vmul.f32 1.0, %v535
        %v537 = vrcp.pop %v500
        %v538 = vmul.f32 1.0, %v537
        %v539 = vrcp.pop %v501
        %v540 = vmul.f32 1.0, %v539
        %v541 = vrcp.pop %v502
        %v542 = vmul.f32 1.0, %v541
        %v543 = vrcp.pop %v503
        %v544 = vmul.f32 1.0, %v543
        %v545 = vrcp.pop %v504
        %v546 = vmul.f32 1.0, %v545
        %v547 = vrcp.pop %v505
        %v548 = vmul.f32 1.0, %v547
        %v549 = vrcp.pop %v506
        %v550 = vmul.f32 1.0, %v549
        %v551 = vrcp.pop %v507
        %v552 = vmul.f32 1.0, %v551
        %v553 = vrcp.pop %v508
        %v554 = vmul.f32 1.0, %v553
        %v555 = vrcp.pop %v509
        %v556 = vmul.f32 1.0, %v555
        %v557 = vrcp.pop %v510
        %v558 = vmul.f32 1.0, %v557
        %v559 = vrcp.pop %v511
        %v560 = vmul.f32 1.0, %v559
        %v561 = vrcp.pop %v512
        %v562 = vmul.f32 1.0, %v561
        %v563 = vrcp.pop %v513
        %v564 = vmul.f32 1.0, %v563
        %v565 = vrcp.pop %v514
        %v566 = vmul.f32 1.0, %v565
        %v567 = vrcp.pop %v515
        %v568 = vmul.f32 1.0, %v567
        %v569 = vrcp.pop %v516
        %v570 = vmul.f32 1.0, %v569
        %v571 = vrcp.pop %v517
        %v572 = vmul.f32 1.0, %v571
        %v573 = vrcp.pop %v518
        %v574 = vmul.f32 1.0, %v573
        %v575 = vrcp.pop %v519
        %v576 = vmul.f32 1.0, %v575
        %v577 = vrcp.pop %v520
        %v578 = vmul.f32 1.0, %v577
        %v579 = vrcp.pop %v521
        %v580 = vmul.f32 1.0, %v579
        %v581 = vrcp.pop %v522
        %v582 = vmul.f32 1.0, %v581
        %v583 = vrcp.pop %v523
        %v584 = vmul.f32 1.0, %v583
        %v585 = vrcp.pop %v524
        %v586 = vmul.f32 1.0, %v585
        %v587 = vrcp.pop %v525
        %v588 = vmul.f32 1.0, %v587
        %v589 = vrcp.pop %v526
        %v590 = vmul.f32 1.0, %v589
        %591 = vst [vmem:[%s253] sm:$0xff] %v528
        %592 = vst [vmem:[%s253 + $0x40] sm:$0xff] %v530
        %593 = vst [vmem:[%s253 + $0x80] sm:$0xff] %v532
        %594 = vst [vmem:[%s253 + $0xc0] sm:$0xff] %v534
        %595 = vst [vmem:[%s253 + $0x100] sm:$0xff] %v536
        %596 = vst [vmem:[%s253 + $0x140] sm:$0xff] %v538
        %597 = vst [vmem:[%s253 + $0x180] sm:$0xff] %v540
        %598 = vst [vmem:[%s253 + $0x1c0] sm:$0xff] %v542
        %599 = vst [vmem:[%s253 + $0x200] sm:$0xff] %v544
        %600 = vst [vmem:[%s253 + $0x240] sm:$0xff] %v546
        %601 = vst [vmem:[%s253 + $0x280] sm:$0xff] %v548
        %602 = vst [vmem:[%s253 + $0x2c0] sm:$0xff] %v550
        %603 = vst [vmem:[%s253 + $0x300] sm:$0xff] %v552
        %604 = vst [vmem:[%s253 + $0x340] sm:$0xff] %v554
        %605 = vst [vmem:[%s253 + $0x380] sm:$0xff] %v556
        %606 = vst [vmem:[%s253 + $0x3c0] sm:$0xff] %v558
        %607 = vst [vmem:[%s253 + $0x400] sm:$0xff] %v560
        %608 = vst [vmem:[%s253 + $0x440] sm:$0xff] %v562
        %609 = vst [vmem:[%s253 + $0x480] sm:$0xff] %v564
        %610 = vst [vmem:[%s253 + $0x4c0] sm:$0xff] %v566
        %611 = vst [vmem:[%s253 + $0x500] sm:$0xff] %v568
        %612 = vst [vmem:[%s253 + $0x540] sm:$0xff] %v570
        %613 = vst [vmem:[%s253 + $0x580] sm:$0xff] %v572
        %614 = vst [vmem:[%s253 + $0x5c0] sm:$0xff] %v574
        %615 = vst [vmem:[%s253 + $0x600] sm:$0xff] %v576
        %616 = vst [vmem:[%s253 + $0x640] sm:$0xff] %v578
        %617 = vst [vmem:[%s253 + $0x680] sm:$0xff] %v580
        %618 = vst [vmem:[%s253 + $0x6c0] sm:$0xff] %v582
        %619 = vst [vmem:[%s253 + $0x700] sm:$0xff] %v584
        %620 = vst [vmem:[%s253 + $0x740] sm:$0xff] %v586
        %621 = vst [vmem:[%s253 + $0x780] sm:$0xff] %v588
        %622 = vst [vmem:[%s253 + $0x7c0] sm:$0xff] %v590
        %v623 = vld [vmem:[#allocation5 + $0x1] sm:$0x1]
        %v624 = vld [vmem:[#allocation7 + $0x1] sm:$0x1]
        %v625 = vld [vmem:[#allocation8 + $0x1] sm:$0x1]
        %v626 = vlaneseq
        %v627 = vshrl.u32 %v626, 7
        %v628 = vsub.s32 0, %v627
        %v629 = vrot.slane %v623, %v628
        %v630 = vmul.f32 %v256, %v629
        %v631 = vmul.f32 %v257, %v629
        %v632 = vmul.f32 %v258, %v629
        %v633 = vmul.f32 %v259, %v629
        %v634 = vmul.f32 %v260, %v629
        %v635 = vmul.f32 %v261, %v629
        %v636 = vmul.f32 %v262, %v629
        %v637 = vmul.f32 %v263, %v629
        %v638 = vmul.f32 %v264, %v629
        %v639 = vmul.f32 %v265, %v629
        %v640 = vmul.f32 %v266, %v629
        %v641 = vmul.f32 %v267, %v629
        %v642 = vmul.f32 %v268, %v629
        %v643 = vmul.f32 %v269, %v629
        %v644 = vmul.f32 %v270, %v629
        %v645 = vmul.f32 %v271, %v629
        %v646 = vmul.f32 %v272, %v629
        %v647 = vmul.f32 %v273, %v629
        %v648 = vmul.f32 %v274, %v629
        %v649 = vmul.f32 %v275, %v629
        %v650 = vmul.f32 %v276, %v629
        %v651 = vmul.f32 %v277, %v629
        %v652 = vmul.f32 %v278, %v629
        %v653 = vmul.f32 %v279, %v629
        %v654 = vmul.f32 %v280, %v629
        %v655 = vmul.f32 %v281, %v629
        %v656 = vmul.f32 %v282, %v629
        %v657 = vmul.f32 %v283, %v629
        %v658 = vmul.f32 %v284, %v629
        %v659 = vmul.f32 %v285, %v629
        %v660 = vmul.f32 %v286, %v629
        %v661 = vmul.f32 %v287, %v629
        %v662 = vlaneseq
        %v663 = vshrl.u32 %v662, 7
        %v664 = vsub.s32 0, %v663
        %v665 = vrot.slane %v624, %v664
        %v666 = vsub.f32 %v630, %v665
        %v667 = vsub.f32 %v631, %v665
        %v668 = vsub.f32 %v632, %v665
        %v669 = vsub.f32 %v633, %v665
        %v670 = vsub.f32 %v634, %v665
        %v671 = vsub.f32 %v635, %v665
        %v672 = vsub.f32 %v636, %v665
        %v673 = vsub.f32 %v637, %v665
        %v674 = vsub.f32 %v638, %v665
        %v675 = vsub.f32 %v639, %v665
        %v676 = vsub.f32 %v640, %v665
        %v677 = vsub.f32 %v641, %v665
        %v678 = vsub.f32 %v642, %v665
        %v679 = vsub.f32 %v643, %v665
        %v680 = vsub.f32 %v644, %v665
        %v681 = vsub.f32 %v645, %v665
        %v682 = vsub.f32 %v646, %v665
        %v683 = vsub.f32 %v647, %v665
        %v684 = vsub.f32 %v648, %v665
        %v685 = vsub.f32 %v649, %v665
        %v686 = vsub.f32 %v650, %v665
        %v687 = vsub.f32 %v651, %v665
        %v688 = vsub.f32 %v652, %v665
        %v689 = vsub.f32 %v653, %v665
        %v690 = vsub.f32 %v654, %v665
        %v691 = vsub.f32 %v655, %v665
        %v692 = vsub.f32 %v656, %v665
        %v693 = vsub.f32 %v657, %v665
        %v694 = vsub.f32 %v658, %v665
        %v695 = vsub.f32 %v659, %v665
        %v696 = vsub.f32 %v660, %v665
        %v697 = vsub.f32 %v661, %v665
        %v698 = vlaneseq
        %v699 = vshrl.u32 %v698, 7
        %v700 = vsub.s32 0, %v699
        %v701 = vrot.slane %v625, %v700
        %v702 = vmul.f32 %v701, %v666
        %v703 = vmul.f32 %v701, %v667
        %v704 = vmul.f32 %v701, %v668
        %v705 = vmul.f32 %v701, %v669
        %v706 = vmul.f32 %v701, %v670
        %v707 = vmul.f32 %v701, %v671
        %v708 = vmul.f32 %v701, %v672
        %v709 = vmul.f32 %v701, %v673
        %v710 = vmul.f32 %v701, %v674
        %v711 = vmul.f32 %v701, %v675
        %v712 = vmul.f32 %v701, %v676
        %v713 = vmul.f32 %v701, %v677
        %v714 = vmul.f32 %v701, %v678
        %v715 = vmul.f32 %v701, %v679
        %v716 = vmul.f32 %v701, %v680
        %v717 = vmul.f32 %v701, %v681
        %v718 = vmul.f32 %v701, %v682
        %v719 = vmul.f32 %v701, %v683
        %v720 = vmul.f32 %v701, %v684
        %v721 = vmul.f32 %v701, %v685
        %v722 = vmul.f32 %v701, %v686
        %v723 = vmul.f32 %v701, %v687
        %v724 = vmul.f32 %v701, %v688
        %v725 = vmul.f32 %v701, %v689
        %v726 = vmul.f32 %v701, %v690
        %v727 = vmul.f32 %v701, %v691
        %v728 = vmul.f32 %v701, %v692
        %v729 = vmul.f32 %v701, %v693
        %v730 = vmul.f32 %v701, %v694
        %v731 = vmul.f32 %v701, %v695
        %v732 = vmul.f32 %v701, %v696
        %v733 = vmul.f32 %v701, %v697
        %v734 = vsub.f32 0.0, %v702
        %v735 = vsub.f32 0.0, %v703
        %v736 = vsub.f32 0.0, %v704
        %v737 = vsub.f32 0.0, %v705
        %v738 = vsub.f32 0.0, %v706
        %v739 = vsub.f32 0.0, %v707
        %v740 = vsub.f32 0.0, %v708
        %v741 = vsub.f32 0.0, %v709
        %v742 = vsub.f32 0.0, %v710
        %v743 = vsub.f32 0.0, %v711
        %v744 = vsub.f32 0.0, %v712
        %v745 = vsub.f32 0.0, %v713
        %v746 = vsub.f32 0.0, %v714
        %v747 = vsub.f32 0.0, %v715
        %v748 = vsub.f32 0.0, %v716
        %v749 = vsub.f32 0.0, %v717
        %v750 = vsub.f32 0.0, %v718
        %v751 = vsub.f32 0.0, %v719
        %v752 = vsub.f32 0.0, %v720
        %v753 = vsub.f32 0.0, %v721
        %v754 = vsub.f32 0.0, %v722
        %v755 = vsub.f32 0.0, %v723
        %v756 = vsub.f32 0.0, %v724
        %v757 = vsub.f32 0.0, %v725
        %v758 = vsub.f32 0.0, %v726
        %v759 = vsub.f32 0.0, %v727
        %v760 = vsub.f32 0.0, %v728
        %v761 = vsub.f32 0.0, %v729
        %v762 = vsub.f32 0.0, %v730
        %v763 = vsub.f32 0.0, %v731
        %v764 = vsub.f32 0.0, %v732
        %v765 = vsub.f32 0.0, %v733
        %v766 = vmul.f32 %v734, 1.442695
        %v767 = vpow.pop %v766
        %v768 = vmul.f32 %v735, 1.442695
        %v769 = vpow.pop %v768
        %v770 = vmul.f32 %v736, 1.442695
        %v771 = vpow.pop %v770
        %v772 = vmul.f32 %v737, 1.442695
        %v773 = vpow.pop %v772
        %v774 = vmul.f32 %v738, 1.442695
        %v775 = vpow.pop %v774
        %v776 = vmul.f32 %v739, 1.442695
        %v777 = vpow.pop %v776
        %v778 = vmul.f32 %v740, 1.442695
        %v779 = vpow.pop %v778
        %v780 = vmul.f32 %v741, 1.442695
        %v781 = vpow.pop %v780
        %v782 = vmul.f32 %v742, 1.442695
        %v783 = vpow.pop %v782
        %v784 = vmul.f32 %v743, 1.442695
        %v785 = vpow.pop %v784
        %v786 = vmul.f32 %v744, 1.442695
        %v787 = vpow.pop %v786
        %v788 = vmul.f32 %v745, 1.442695
        %v789 = vpow.pop %v788
        %v790 = vmul.f32 %v746, 1.442695
        %v791 = vpow.pop %v790
        %v792 = vmul.f32 %v747, 1.442695
        %v793 = vpow.pop %v792
        %v794 = vmul.f32 %v748, 1.442695
        %v795 = vpow.pop %v794
        %v796 = vmul.f32 %v749, 1.442695
        %v797 = vpow.pop %v796
        %v798 = vmul.f32 %v750, 1.442695
        %v799 = vpow.pop %v798
        %v800 = vmul.f32 %v751, 1.442695
        %v801 = vpow.pop %v800
        %v802 = vmul.f32 %v752, 1.442695
        %v803 = vpow.pop %v802
        %v804 = vmul.f32 %v753, 1.442695
        %v805 = vpow.pop %v804
        %v806 = vmul.f32 %v754, 1.442695
        %v807 = vpow.pop %v806
        %v808 = vmul.f32 %v755, 1.442695
        %v809 = vpow.pop %v808
        %v810 = vmul.f32 %v756, 1.442695
        %v811 = vpow.pop %v810
        %v812 = vmul.f32 %v757, 1.442695
        %v813 = vpow.pop %v812
        %v814 = vmul.f32 %v758, 1.442695
        %v815 = vpow.pop %v814
        %v816 = vmul.f32 %v759, 1.442695
        %v817 = vpow.pop %v816
        %v818 = vmul.f32 %v760, 1.442695
        %v819 = vpow.pop %v818
        %v820 = vmul.f32 %v761, 1.442695
        %v821 = vpow.pop %v820
        %v822 = vmul.f32 %v762, 1.442695
        %v823 = vpow.pop %v822
        %v824 = vmul.f32 %v763, 1.442695
        %v825 = vpow.pop %v824
        %v826 = vmul.f32 %v764, 1.442695
        %v827 = vpow.pop %v826
        %v828 = vmul.f32 %v765, 1.442695
        %v829 = vpow.pop %v828
        %v830 = vadd.f32 %v767, 1.0
        %v831 = vadd.f32 %v769, 1.0
        %v832 = vadd.f32 %v771, 1.0
        %v833 = vadd.f32 %v773, 1.0
        %v834 = vadd.f32 %v775, 1.0
        %v835 = vadd.f32 %v777, 1.0
        %v836 = vadd.f32 %v779, 1.0
        %v837 = vadd.f32 %v781, 1.0
        %v838 = vadd.f32 %v783, 1.0
        %v839 = vadd.f32 %v785, 1.0
        %v840 = vadd.f32 %v787, 1.0
        %v841 = vadd.f32 %v789, 1.0
        %v842 = vadd.f32 %v791, 1.0
        %v843 = vadd.f32 %v793, 1.0
        %v844 = vadd.f32 %v795, 1.0
        %v845 = vadd.f32 %v797, 1.0
        %v846 = vadd.f32 %v799, 1.0
        %v847 = vadd.f32 %v801, 1.0
        %v848 = vadd.f32 %v803, 1.0
        %v849 = vadd.f32 %v805, 1.0
        %v850 = vadd.f32 %v807, 1.0
        %v851 = vadd.f32 %v809, 1.0
        %v852 = vadd.f32 %v811, 1.0
        %v853 = vadd.f32 %v813, 1.0
        %v854 = vadd.f32 %v815, 1.0
        %v855 = vadd.f32 %v817, 1.0
        %v856 = vadd.f32 %v819, 1.0
        %v857 = vadd.f32 %v821, 1.0
        %v858 = vadd.f32 %v823, 1.0
        %v859 = vadd.f32 %v825, 1.0
        %v860 = vadd.f32 %v827, 1.0
        %v861 = vadd.f32 %v829, 1.0
        %v862 = vrcp.pop %v830
        %v863 = vmul.f32 1.0, %v862
        %v864 = vrcp.pop %v831
        %v865 = vmul.f32 1.0, %v864
        %v866 = vrcp.pop %v832
        %v867 = vmul.f32 1.0, %v866
        %v868 = vrcp.pop %v833
        %v869 = vmul.f32 1.0, %v868
        %v870 = vrcp.pop %v834
        %v871 = vmul.f32 1.0, %v870
        %v872 = vrcp.pop %v835
        %v873 = vmul.f32 1.0, %v872
        %v874 = vrcp.pop %v836
        %v875 = vmul.f32 1.0, %v874
        %v876 = vrcp.pop %v837
        %v877 = vmul.f32 1.0, %v876
        %v878 = vrcp.pop %v838
        %v879 = vmul.f32 1.0, %v878
        %v880 = vrcp.pop %v839
        %v881 = vmul.f32 1.0, %v880
        %v882 = vrcp.pop %v840
        %v883 = vmul.f32 1.0, %v882
        %v884 = vrcp.pop %v841
        %v885 = vmul.f32 1.0, %v884
        %v886 = vrcp.pop %v842
        %v887 = vmul.f32 1.0, %v886
        %v888 = vrcp.pop %v843
        %v889 = vmul.f32 1.0, %v888
        %v890 = vrcp.pop %v844
        %v891 = vmul.f32 1.0, %v890
        %v892 = vrcp.pop %v845
        %v893 = vmul.f32 1.0, %v892
        %v894 = vrcp.pop %v846
        %v895 = vmul.f32 1.0, %v894
        %v896 = vrcp.pop %v847
        %v897 = vmul.f32 1.0, %v896
        %v898 = vrcp.pop %v848
        %v899 = vmul.f32 1.0, %v898
        %v900 = vrcp.pop %v849
        %v901 = vmul.f32 1.0, %v900
        %v902 = vrcp.pop %v850
        %v903 = vmul.f32 1.0, %v902
        %v904 = vrcp.pop %v851
        %v905 = vmul.f32 1.0, %v904
        %v906 = vrcp.pop %v852
        %v907 = vmul.f32 1.0, %v906
        %v908 = vrcp.pop %v853
        %v909 = vmul.f32 1.0, %v908
        %v910 = vrcp.pop %v854
        %v911 = vmul.f32 1.0, %v910
        %v912 = vrcp.pop %v855
        %v913 = vmul.f32 1.0, %v912
        %v914 = vrcp.pop %v856
        %v915 = vmul.f32 1.0, %v914
        %v916 = vrcp.pop %v857
        %v917 = vmul.f32 1.0, %v916
        %v918 = vrcp.pop %v858
        %v919 = vmul.f32 1.0, %v918
        %v920 = vrcp.pop %v859
        %v921 = vmul.f32 1.0, %v920
        %v922 = vrcp.pop %v860
        %v923 = vmul.f32 1.0, %v922
        %v924 = vrcp.pop %v861
        %v925 = vmul.f32 1.0, %v924
        %926 = vst [vmem:[%s253 + $0x8] sm:$0xff] %v863
        %927 = vst [vmem:[%s253 + $0x48] sm:$0xff] %v865
        %928 = vst [vmem:[%s253 + $0x88] sm:$0xff] %v867
        %929 = vst [vmem:[%s253 + $0xc8] sm:$0xff] %v869
        %930 = vst [vmem:[%s253 + $0x108] sm:$0xff] %v871
        %931 = vst [vmem:[%s253 + $0x148] sm:$0xff] %v873
        %932 = vst [vmem:[%s253 + $0x188] sm:$0xff] %v875
        %933 = vst [vmem:[%s253 + $0x1c8] sm:$0xff] %v877
        %934 = vst [vmem:[%s253 + $0x208] sm:$0xff] %v879
        %935 = vst [vmem:[%s253 + $0x248] sm:$0xff] %v881
        %936 = vst [vmem:[%s253 + $0x288] sm:$0xff] %v883
        %937 = vst [vmem:[%s253 + $0x2c8] sm:$0xff] %v885
        %938 = vst [vmem:[%s253 + $0x308] sm:$0xff] %v887
        %939 = vst [vmem:[%s253 + $0x348] sm:$0xff] %v889
        %940 = vst [vmem:[%s253 + $0x388] sm:$0xff] %v891
        %941 = vst [vmem:[%s253 + $0x3c8] sm:$0xff] %v893
        %942 = vst [vmem:[%s253 + $0x408] sm:$0xff] %v895
        %943 = vst [vmem:[%s253 + $0x448] sm:$0xff] %v897
        %944 = vst [vmem:[%s253 + $0x488] sm:$0xff] %v899
        %945 = vst [vmem:[%s253 + $0x4c8] sm:$0xff] %v901
        %946 = vst [vmem:[%s253 + $0x508] sm:$0xff] %v903
        %947 = vst [vmem:[%s253 + $0x548] sm:$0xff] %v905
        %948 = vst [vmem:[%s253 + $0x588] sm:$0xff] %v907
        %949 = vst [vmem:[%s253 + $0x5c8] sm:$0xff] %v909
        %950 = vst [vmem:[%s253 + $0x608] sm:$0xff] %v911
        %951 = vst [vmem:[%s253 + $0x648] sm:$0xff] %v913
        %952 = vst [vmem:[%s253 + $0x688] sm:$0xff] %v915
        %953 = vst [vmem:[%s253 + $0x6c8] sm:$0xff] %v917
        %954 = vst [vmem:[%s253 + $0x708] sm:$0xff] %v919
        %955 = vst [vmem:[%s253 + $0x748] sm:$0xff] %v921
        %956 = vst [vmem:[%s253 + $0x788] sm:$0xff] %v923
        %957 = vst [vmem:[%s253 + $0x7c8] sm:$0xff] %v925
        %v958 = vld [vmem:[#allocation5 + $0x2] sm:$0x1]
        %v959 = vld [vmem:[#allocation7 + $0x2] sm:$0x1]
        %v960 = vld [vmem:[#allocation8 + $0x2] sm:$0x1]
        %v961 = vlaneseq
        %v962 = vshrl.u32 %v961, 7
        %v963 = vsub.s32 0, %v962
        %v964 = vrot.slane %v958, %v963
        %v965 = vmul.f32 %v256, %v964
        %v966 = vmul.f32 %v257, %v964
        %v967 = vmul.f32 %v258, %v964
        %v968 = vmul.f32 %v259, %v964
        %v969 = vmul.f32 %v260, %v964
        %v970 = vmul.f32 %v261, %v964
        %v971 = vmul.f32 %v262, %v964
        %v972 = vmul.f32 %v263, %v964
        %v973 = vmul.f32 %v264, %v964
        %v974 = vmul.f32 %v265, %v964
        %v975 = vmul.f32 %v266, %v964
        %v976 = vmul.f32 %v267, %v964
        %v977 = vmul.f32 %v268, %v964
        %v978 = vmul.f32 %v269, %v964
        %v979 = vmul.f32 %v270, %v964
        %v980 = vmul.f32 %v271, %v964
        %v981 = vmul.f32 %v272, %v964
        %v982 = vmul.f32 %v273, %v964
        %v983 = vmul.f32 %v274, %v964
        %v984 = vmul.f32 %v275, %v964
        %v985 = vmul.f32 %v276, %v964
        %v986 = vmul.f32 %v277, %v964
        %v987 = vmul.f32 %v278, %v964
        %v988 = vmul.f32 %v279, %v964
        %v989 = vmul.f32 %v280, %v964
        %v990 = vmul.f32 %v281, %v964
        %v991 = vmul.f32 %v282, %v964
        %v992 = vmul.f32 %v283, %v964
        %v993 = vmul.f32 %v284, %v964
        %v994 = vmul.f32 %v285, %v964
        %v995 = vmul.f32 %v286, %v964
        %v996 = vmul.f32 %v287, %v964
        %v997 = vlaneseq
        %v998 = vshrl.u32 %v997, 7
        %v999 = vsub.s32 0, %v998
        %v1000 = vrot.slane %v959, %v999
        %v1001 = vsub.f32 %v965, %v1000
        %v1002 = vsub.f32 %v966, %v1000
        %v1003 = vsub.f32 %v967, %v1000
        %v1004 = vsub.f32 %v968, %v1000
        %v1005 = vsub.f32 %v969, %v1000
        %v1006 = vsub.f32 %v970, %v1000
        %v1007 = vsub.f32 %v971, %v1000
        %v1008 = vsub.f32 %v972, %v1000
        %v1009 = vsub.f32 %v973, %v1000
        %v1010 = vsub.f32 %v974, %v1000
        %v1011 = vsub.f32 %v975, %v1000
        %v1012 = vsub.f32 %v976, %v1000
        %v1013 = vsub.f32 %v977, %v1000
        %v1014 = vsub.f32 %v978, %v1000
        %v1015 = vsub.f32 %v979, %v1000
        %v1016 = vsub.f32 %v980, %v1000
        %v1017 = vsub.f32 %v981, %v1000
        %v1018 = vsub.f32 %v982, %v1000
        %v1019 = vsub.f32 %v983, %v1000
        %v1020 = vsub.f32 %v984, %v1000
        %v1021 = vsub.f32 %v985, %v1000
        %v1022 = vsub.f32 %v986, %v1000
        %v1023 = vsub.f32 %v987, %v1000
        %v1024 = vsub.f32 %v988, %v1000
        %v1025 = vsub.f32 %v989, %v1000
        %v1026 = vsub.f32 %v990, %v1000
        %v1027 = vsub.f32 %v991, %v1000
        %v1028 = vsub.f32 %v992, %v1000
        %v1029 = vsub.f32 %v993, %v1000
        %v1030 = vsub.f32 %v994, %v1000
        %v1031 = vsub.f32 %v995, %v1000
        %v1032 = vsub.f32 %v996, %v1000
        %v1033 = vlaneseq
        %v1034 = vshrl.u32 %v1033, 7
        %v1035 = vsub.s32 0, %v1034
        %v1036 = vrot.slane %v960, %v1035
        %v1037 = vmul.f32 %v1036, %v1001
        %v1038 = vmul.f32 %v1036, %v1002
        %v1039 = vmul.f32 %v1036, %v1003
        %v1040 = vmul.f32 %v1036, %v1004
        %v1041 = vmul.f32 %v1036, %v1005
        %v1042 = vmul.f32 %v1036, %v1006
        %v1043 = vmul.f32 %v1036, %v1007
        %v1044 = vmul.f32 %v1036, %v1008
        %v1045 = vmul.f32 %v1036, %v1009
        %v1046 = vmul.f32 %v1036, %v1010
        %v1047 = vmul.f32 %v1036, %v1011
        %v1048 = vmul.f32 %v1036, %v1012
        %v1049 = vmul.f32 %v1036, %v1013
        %v1050 = vmul.f32 %v1036, %v1014
        %v1051 = vmul.f32 %v1036, %v1015
        %v1052 = vmul.f32 %v1036, %v1016
        %v1053 = vmul.f32 %v1036, %v1017
        %v1054 = vmul.f32 %v1036, %v1018
        %v1055 = vmul.f32 %v1036, %v1019
        %v1056 = vmul.f32 %v1036, %v1020
        %v1057 = vmul.f32 %v1036, %v1021
        %v1058 = vmul.f32 %v1036, %v1022
        %v1059 = vmul.f32 %v1036, %v1023
        %v1060 = vmul.f32 %v1036, %v1024
        %v1061 = vmul.f32 %v1036, %v1025
        %v1062 = vmul.f32 %v1036, %v1026
        %v1063 = vmul.f32 %v1036, %v1027
        %v1064 = vmul.f32 %v1036, %v1028
        %v1065 = vmul.f32 %v1036, %v1029
        %v1066 = vmul.f32 %v1036, %v1030
        %v1067 = vmul.f32 %v1036, %v1031
        %v1068 = vmul.f32 %v1036, %v1032
        %v1069 = vsub.f32 0.0, %v1037
        %v1070 = vsub.f32 0.0, %v1038
        %v1071 = vsub.f32 0.0, %v1039
        %v1072 = vsub.f32 0.0, %v1040
        %v1073 = vsub.f32 0.0, %v1041
        %v1074 = vsub.f32 0.0, %v1042
        %v1075 = vsub.f32 0.0, %v1043
        %v1076 = vsub.f32 0.0, %v1044
        %v1077 = vsub.f32 0.0, %v1045
        %v1078 = vsub.f32 0.0, %v1046
        %v1079 = vsub.f32 0.0, %v1047
        %v1080 = vsub.f32 0.0, %v1048
        %v1081 = vsub.f32 0.0, %v1049
        %v1082 = vsub.f32 0.0, %v1050
        %v1083 = vsub.f32 0.0, %v1051
        %v1084 = vsub.f32 0.0, %v1052
        %v1085 = vsub.f32 0.0, %v1053
        %v1086 = vsub.f32 0.0, %v1054
        %v1087 = vsub.f32 0.0, %v1055
        %v1088 = vsub.f32 0.0, %v1056
        %v1089 = vsub.f32 0.0, %v1057
        %v1090 = vsub.f32 0.0, %v1058
        %v1091 = vsub.f32 0.0, %v1059
        %v1092 = vsub.f32 0.0, %v1060
        %v1093 = vsub.f32 0.0, %v1061
        %v1094 = vsub.f32 0.0, %v1062
        %v1095 = vsub.f32 0.0, %v1063
        %v1096 = vsub.f32 0.0, %v1064
        %v1097 = vsub.f32 0.0, %v1065
        %v1098 = vsub.f32 0.0, %v1066
        %v1099 = vsub.f32 0.0, %v1067
        %v1100 = vsub.f32 0.0, %v1068
        %v1101 = vmul.f32 %v1069, 1.442695
        %v1102 = vpow.pop %v1101
        %v1103 = vmul.f32 %v1070, 1.442695
        %v1104 = vpow.pop %v1103
        %v1105 = vmul.f32 %v1071, 1.442695
        %v1106 = vpow.pop %v1105
        %v1107 = vmul.f32 %v1072, 1.442695
        %v1108 = vpow.pop %v1107
        %v1109 = vmul.f32 %v1073, 1.442695
        %v1110 = vpow.pop %v1109
        %v1111 = vmul.f32 %v1074, 1.442695
        %v1112 = vpow.pop %v1111
        %v1113 = vmul.f32 %v1075, 1.442695
        %v1114 = vpow.pop %v1113
        %v1115 = vmul.f32 %v1076, 1.442695
        %v1116 = vpow.pop %v1115
        %v1117 = vmul.f32 %v1077, 1.442695
        %v1118 = vpow.pop %v1117
        %v1119 = vmul.f32 %v1078, 1.442695
        %v1120 = vpow.pop %v1119
        %v1121 = vmul.f32 %v1079, 1.442695
        %v1122 = vpow.pop %v1121
        %v1123 = vmul.f32 %v1080, 1.442695
        %v1124 = vpow.pop %v1123
        %v1125 = vmul.f32 %v1081, 1.442695
        %v1126 = vpow.pop %v1125
        %v1127 = vmul.f32 %v1082, 1.442695
        %v1128 = vpow.pop %v1127
        %v1129 = vmul.f32 %v1083, 1.442695
        %v1130 = vpow.pop %v1129
        %v1131 = vmul.f32 %v1084, 1.442695
        %v1132 = vpow.pop %v1131
        %v1133 = vmul.f32 %v1085, 1.442695
        %v1134 = vpow.pop %v1133
        %v1135 = vmul.f32 %v1086, 1.442695
        %v1136 = vpow.pop %v1135
        %v1137 = vmul.f32 %v1087, 1.442695
        %v1138 = vpow.pop %v1137
        %v1139 = vmul.f32 %v1088, 1.442695
        %v1140 = vpow.pop %v1139
        %v1141 = vmul.f32 %v1089, 1.442695
        %v1142 = vpow.pop %v1141
        %v1143 = vmul.f32 %v1090, 1.442695
        %v1144 = vpow.pop %v1143
        %v1145 = vmul.f32 %v1091, 1.442695
        %v1146 = vpow.pop %v1145
        %v1147 = vmul.f32 %v1092, 1.442695
        %v1148 = vpow.pop %v1147
        %v1149 = vmul.f32 %v1093, 1.442695
        %v1150 = vpow.pop %v1149
        %v1151 = vmul.f32 %v1094, 1.442695
        %v1152 = vpow.pop %v1151
        %v1153 = vmul.f32 %v1095, 1.442695
        %v1154 = vpow.pop %v1153
        %v1155 = vmul.f32 %v1096, 1.442695
        %v1156 = vpow.pop %v1155
        %v1157 = vmul.f32 %v1097, 1.442695
        %v1158 = vpow.pop %v1157
        %v1159 = vmul.f32 %v1098, 1.442695
        %v1160 = vpow.pop %v1159
        %v1161 = vmul.f32 %v1099, 1.442695
        %v1162 = vpow.pop %v1161
        %v1163 = vmul.f32 %v1100, 1.442695
        %v1164 = vpow.pop %v1163
        %v1165 = vadd.f32 %v1102, 1.0
        %v1166 = vadd.f32 %v1104, 1.0
        %v1167 = vadd.f32 %v1106, 1.0
        %v1168 = vadd.f32 %v1108, 1.0
        %v1169 = vadd.f32 %v1110, 1.0
        %v1170 = vadd.f32 %v1112, 1.0
        %v1171 = vadd.f32 %v1114, 1.0
        %v1172 = vadd.f32 %v1116, 1.0
        %v1173 = vadd.f32 %v1118, 1.0
        %v1174 = vadd.f32 %v1120, 1.0
        %v1175 = vadd.f32 %v1122, 1.0
        %v1176 = vadd.f32 %v1124, 1.0
        %v1177 = vadd.f32 %v1126, 1.0
        %v1178 = vadd.f32 %v1128, 1.0
        %v1179 = vadd.f32 %v1130, 1.0
        %v1180 = vadd.f32 %v1132, 1.0
        %v1181 = vadd.f32 %v1134, 1.0
        %v1182 = vadd.f32 %v1136, 1.0
        %v1183 = vadd.f32 %v1138, 1.0
        %v1184 = vadd.f32 %v1140, 1.0
        %v1185 = vadd.f32 %v1142, 1.0
        %v1186 = vadd.f32 %v1144, 1.0
        %v1187 = vadd.f32 %v1146, 1.0
        %v1188 = vadd.f32 %v1148, 1.0
        %v1189 = vadd.f32 %v1150, 1.0
        %v1190 = vadd.f32 %v1152, 1.0
        %v1191 = vadd.f32 %v1154, 1.0
        %v1192 = vadd.f32 %v1156, 1.0
        %v1193 = vadd.f32 %v1158, 1.0
        %v1194 = vadd.f32 %v1160, 1.0
        %v1195 = vadd.f32 %v1162, 1.0
        %v1196 = vadd.f32 %v1164, 1.0
        %v1197 = vrcp.pop %v1165
        %v1198 = vmul.f32 1.0, %v1197
        %v1199 = vrcp.pop %v1166
        %v1200 = vmul.f32 1.0, %v1199
        %v1201 = vrcp.pop %v1167
        %v1202 = vmul.f32 1.0, %v1201
        %v1203 = vrcp.pop %v1168
        %v1204 = vmul.f32 1.0, %v1203
        %v1205 = vrcp.pop %v1169
        %v1206 = vmul.f32 1.0, %v1205
        %v1207 = vrcp.pop %v1170
        %v1208 = vmul.f32 1.0, %v1207
        %v1209 = vrcp.pop %v1171
        %v1210 = vmul.f32 1.0, %v1209
        %v1211 = vrcp.pop %v1172
        %v1212 = vmul.f32 1.0, %v1211
        %v1213 = vrcp.pop %v1173
        %v1214 = vmul.f32 1.0, %v1213
        %v1215 = vrcp.pop %v1174
        %v1216 = vmul.f32 1.0, %v1215
        %v1217 = vrcp.pop %v1175
        %v1218 = vmul.f32 1.0, %v1217
        %v1219 = vrcp.pop %v1176
        %v1220 = vmul.f32 1.0, %v1219
        %v1221 = vrcp.pop %v1177
        %v1222 = vmul.f32 1.0, %v1221
        %v1223 = vrcp.pop %v1178
        %v1224 = vmul.f32 1.0, %v1223
        %v1225 = vrcp.pop %v1179
        %v1226 = vmul.f32 1.0, %v1225
        %v1227 = vrcp.pop %v1180
        %v1228 = vmul.f32 1.0, %v1227
        %v1229 = vrcp.pop %v1181
        %v1230 = vmul.f32 1.0, %v1229
        %v1231 = vrcp.pop %v1182
        %v1232 = vmul.f32 1.0, %v1231
        %v1233 = vrcp.pop %v1183
        %v1234 = vmul.f32 1.0, %v1233
        %v1235 = vrcp.pop %v1184
        %v1236 = vmul.f32 1.0, %v1235
        %v1237 = vrcp.pop %v1185
        %v1238 = vmul.f32 1.0, %v1237
        %v1239 = vrcp.pop %v1186
        %v1240 = vmul.f32 1.0, %v1239
        %v1241 = vrcp.pop %v1187
        %v1242 = vmul.f32 1.0, %v1241
        %v1243 = vrcp.pop %v1188
        %v1244 = vmul.f32 1.0, %v1243
        %v1245 = vrcp.pop %v1189
        %v1246 = vmul.f32 1.0, %v1245
        %v1247 = vrcp.pop %v1190
        %v1248 = vmul.f32 1.0, %v1247
        %v1249 = vrcp.pop %v1191
        %v1250 = vmul.f32 1.0, %v1249
        %v1251 = vrcp.pop %v1192
        %v1252 = vmul.f32 1.0, %v1251
        %v1253 = vrcp.pop %v1193
        %v1254 = vmul.f32 1.0, %v1253
        %v1255 = vrcp.pop %v1194
        %v1256 = vmul.f32 1.0, %v1255
        %v1257 = vrcp.pop %v1195
        %v1258 = vmul.f32 1.0, %v1257
        %v1259 = vrcp.pop %v1196
        %v1260 = vmul.f32 1.0, %v1259
        %1261 = vst [vmem:[%s253 + $0x10] sm:$0xff] %v1198
        %1262 = vst [vmem:[%s253 + $0x50] sm:$0xff] %v1200
        %1263 = vst [vmem:[%s253 + $0x90] sm:$0xff] %v1202
        %1264 = vst [vmem:[%s253 + $0xd0] sm:$0xff] %v1204
        %1265 = vst [vmem:[%s253 + $0x110] sm:$0xff] %v1206
        %1266 = vst [vmem:[%s253 + $0x150] sm:$0xff] %v1208
        %1267 = vst [vmem:[%s253 + $0x190] sm:$0xff] %v1210
        %1268 = vst [vmem:[%s253 + $0x1d0] sm:$0xff] %v1212
        %1269 = vst [vmem:[%s253 + $0x210] sm:$0xff] %v1214
        %1270 = vst [vmem:[%s253 + $0x250] sm:$0xff] %v1216
        %1271 = vst [vmem:[%s253 + $0x290] sm:$0xff] %v1218
        %1272 = vst [vmem:[%s253 + $0x2d0] sm:$0xff] %v1220
        %1273 = vst [vmem:[%s253 + $0x310] sm:$0xff] %v1222
        %1274 = vst [vmem:[%s253 + $0x350] sm:$0xff] %v1224
        %1275 = vst [vmem:[%s253 + $0x390] sm:$0xff] %v1226
        %1276 = vst [vmem:[%s253 + $0x3d0] sm:$0xff] %v1228
        %1277 = vst [vmem:[%s253 + $0x410] sm:$0xff] %v1230
        %1278 = vst [vmem:[%s253 + $0x450] sm:$0xff] %v1232
        %1279 = vst [vmem:[%s253 + $0x490] sm:$0xff] %v1234
        %1280 = vst [vmem:[%s253 + $0x4d0] sm:$0xff] %v1236
        %1281 = vst [vmem:[%s253 + $0x510] sm:$0xff] %v1238
        %1282 = vst [vmem:[%s253 + $0x550] sm:$0xff] %v1240
        %1283 = vst [vmem:[%s253 + $0x590] sm:$0xff] %v1242
        %1284 = vst [vmem:[%s253 + $0x5d0] sm:$0xff] %v1244
        %1285 = vst [vmem:[%s253 + $0x610] sm:$0xff] %v1246
        %1286 = vst [vmem:[%s253 + $0x650] sm:$0xff] %v1248
        %1287 = vst [vmem:[%s253 + $0x690] sm:$0xff] %v1250
        %1288 = vst [vmem:[%s253 + $0x6d0] sm:$0xff] %v1252
        %1289 = vst [vmem:[%s253 + $0x710] sm:$0xff] %v1254
        %1290 = vst [vmem:[%s253 + $0x750] sm:$0xff] %v1256
        %1291 = vst [vmem:[%s253 + $0x790] sm:$0xff] %v1258
        %1292 = vst [vmem:[%s253 + $0x7d0] sm:$0xff] %v1260
        %v1293 = vld [vmem:[#allocation5 + $0x3] sm:$0x1]
        %v1294 = vld [vmem:[#allocation7 + $0x3] sm:$0x1]
        %v1295 = vld [vmem:[#allocation8 + $0x3] sm:$0x1]
        %v1296 = vlaneseq
        %v1297 = vshrl.u32 %v1296, 7
        %v1298 = vsub.s32 0, %v1297
        %v1299 = vrot.slane %v1293, %v1298
        %v1300 = vmul.f32 %v256, %v1299
        %v1301 = vmul.f32 %v257, %v1299
        %v1302 = vmul.f32 %v258, %v1299
        %v1303 = vmul.f32 %v259, %v1299
        %v1304 = vmul.f32 %v260, %v1299
        %v1305 = vmul.f32 %v261, %v1299
        %v1306 = vmul.f32 %v262, %v1299
        %v1307 = vmul.f32 %v263, %v1299
        %v1308 = vmul.f32 %v264, %v1299
        %v1309 = vmul.f32 %v265, %v1299
        %v1310 = vmul.f32 %v266, %v1299
        %v1311 = vmul.f32 %v267, %v1299
        %v1312 = vmul.f32 %v268, %v1299
        %v1313 = vmul.f32 %v269, %v1299
        %v1314 = vmul.f32 %v270, %v1299
        %v1315 = vmul.f32 %v271, %v1299
        %v1316 = vmul.f32 %v272, %v1299
        %v1317 = vmul.f32 %v273, %v1299
        %v1318 = vmul.f32 %v274, %v1299
        %v1319 = vmul.f32 %v275, %v1299
        %v1320 = vmul.f32 %v276, %v1299
        %v1321 = vmul.f32 %v277, %v1299
        %v1322 = vmul.f32 %v278, %v1299
        %v1323 = vmul.f32 %v279, %v1299
        %v1324 = vmul.f32 %v280, %v1299
        %v1325 = vmul.f32 %v281, %v1299
        %v1326 = vmul.f32 %v282, %v1299
        %v1327 = vmul.f32 %v283, %v1299
        %v1328 = vmul.f32 %v284, %v1299
        %v1329 = vmul.f32 %v285, %v1299
        %v1330 = vmul.f32 %v286, %v1299
        %v1331 = vmul.f32 %v287, %v1299
        %v1332 = vlaneseq
        %v1333 = vshrl.u32 %v1332, 7
        %v1334 = vsub.s32 0, %v1333
        %v1335 = vrot.slane %v1294, %v1334
        %v1336 = vsub.f32 %v1300, %v1335
        %v1337 = vsub.f32 %v1301, %v1335
        %v1338 = vsub.f32 %v1302, %v1335
        %v1339 = vsub.f32 %v1303, %v1335
        %v1340 = vsub.f32 %v1304, %v1335
        %v1341 = vsub.f32 %v1305, %v1335
        %v1342 = vsub.f32 %v1306, %v1335
        %v1343 = vsub.f32 %v1307, %v1335
        %v1344 = vsub.f32 %v1308, %v1335
        %v1345 = vsub.f32 %v1309, %v1335
        %v1346 = vsub.f32 %v1310, %v1335
        %v1347 = vsub.f32 %v1311, %v1335
        %v1348 = vsub.f32 %v1312, %v1335
        %v1349 = vsub.f32 %v1313, %v1335
        %v1350 = vsub.f32 %v1314, %v1335
        %v1351 = vsub.f32 %v1315, %v1335
        %v1352 = vsub.f32 %v1316, %v1335
        %v1353 = vsub.f32 %v1317, %v1335
        %v1354 = vsub.f32 %v1318, %v1335
        %v1355 = vsub.f32 %v1319, %v1335
        %v1356 = vsub.f32 %v1320, %v1335
        %v1357 = vsub.f32 %v1321, %v1335
        %v1358 = vsub.f32 %v1322, %v1335
        %v1359 = vsub.f32 %v1323, %v1335
        %v1360 = vsub.f32 %v1324, %v1335
        %v1361 = vsub.f32 %v1325, %v1335
        %v1362 = vsub.f32 %v1326, %v1335
        %v1363 = vsub.f32 %v1327, %v1335
        %v1364 = vsub.f32 %v1328, %v1335
        %v1365 = vsub.f32 %v1329, %v1335
        %v1366 = vsub.f32 %v1330, %v1335
        %v1367 = vsub.f32 %v1331, %v1335
        %v1368 = vlaneseq
        %v1369 = vshrl.u32 %v1368, 7
        %v1370 = vsub.s32 0, %v1369
        %v1371 = vrot.slane %v1295, %v1370
        %v1372 = vmul.f32 %v1371, %v1336
        %v1373 = vmul.f32 %v1371, %v1337
        %v1374 = vmul.f32 %v1371, %v1338
        %v1375 = vmul.f32 %v1371, %v1339
        %v1376 = vmul.f32 %v1371, %v1340
        %v1377 = vmul.f32 %v1371, %v1341
        %v1378 = vmul.f32 %v1371, %v1342
        %v1379 = vmul.f32 %v1371, %v1343
        %v1380 = vmul.f32 %v1371, %v1344
        %v1381 = vmul.f32 %v1371, %v1345
        %v1382 = vmul.f32 %v1371, %v1346
        %v1383 = vmul.f32 %v1371, %v1347
        %v1384 = vmul.f32 %v1371, %v1348
        %v1385 = vmul.f32 %v1371, %v1349
        %v1386 = vmul.f32 %v1371, %v1350
        %v1387 = vmul.f32 %v1371, %v1351
        %v1388 = vmul.f32 %v1371, %v1352
        %v1389 = vmul.f32 %v1371, %v1353
        %v1390 = vmul.f32 %v1371, %v1354
        %v1391 = vmul.f32 %v1371, %v1355
        %v1392 = vmul.f32 %v1371, %v1356
        %v1393 = vmul.f32 %v1371, %v1357
        %v1394 = vmul.f32 %v1371, %v1358
        %v1395 = vmul.f32 %v1371, %v1359
        %v1396 = vmul.f32 %v1371, %v1360
        %v1397 = vmul.f32 %v1371, %v1361
        %v1398 = vmul.f32 %v1371, %v1362
        %v1399 = vmul.f32 %v1371, %v1363
        %v1400 = vmul.f32 %v1371, %v1364
        %v1401 = vmul.f32 %v1371, %v1365
        %v1402 = vmul.f32 %v1371, %v1366
        %v1403 = vmul.f32 %v1371, %v1367
        %v1404 = vsub.f32 0.0, %v1372
        %v1405 = vsub.f32 0.0, %v1373
        %v1406 = vsub.f32 0.0, %v1374
        %v1407 = vsub.f32 0.0, %v1375
        %v1408 = vsub.f32 0.0, %v1376
        %v1409 = vsub.f32 0.0, %v1377
        %v1410 = vsub.f32 0.0, %v1378
        %v1411 = vsub.f32 0.0, %v1379
        %v1412 = vsub.f32 0.0, %v1380
        %v1413 = vsub.f32 0.0, %v1381
        %v1414 = vsub.f32 0.0, %v1382
        %v1415 = vsub.f32 0.0, %v1383
        %v1416 = vsub.f32 0.0, %v1384
        %v1417 = vsub.f32 0.0, %v1385
        %v1418 = vsub.f32 0.0, %v1386
        %v1419 = vsub.f32 0.0, %v1387
        %v1420 = vsub.f32 0.0, %v1388
        %v1421 = vsub.f32 0.0, %v1389
        %v1422 = vsub.f32 0.0, %v1390
        %v1423 = vsub.f32 0.0, %v1391
        %v1424 = vsub.f32 0.0, %v1392
        %v1425 = vsub.f32 0.0, %v1393
        %v1426 = vsub.f32 0.0, %v1394
        %v1427 = vsub.f32 0.0, %v1395
        %v1428 = vsub.f32 0.0, %v1396
        %v1429 = vsub.f32 0.0, %v1397
        %v1430 = vsub.f32 0.0, %v1398
        %v1431 = vsub.f32 0.0, %v1399
        %v1432 = vsub.f32 0.0, %v1400
        %v1433 = vsub.f32 0.0, %v1401
        %v1434 = vsub.f32 0.0, %v1402
        %v1435 = vsub.f32 0.0, %v1403
        %v1436 = vmul.f32 %v1404, 1.442695
        %v1437 = vpow.pop %v1436
        %v1438 = vmul.f32 %v1405, 1.442695
        %v1439 = vpow.pop %v1438
        %v1440 = vmul.f32 %v1406, 1.442695
        %v1441 = vpow.pop %v1440
        %v1442 = vmul.f32 %v1407, 1.442695
        %v1443 = vpow.pop %v1442
        %v1444 = vmul.f32 %v1408, 1.442695
        %v1445 = vpow.pop %v1444
        %v1446 = vmul.f32 %v1409, 1.442695
        %v1447 = vpow.pop %v1446
        %v1448 = vmul.f32 %v1410, 1.442695
        %v1449 = vpow.pop %v1448
        %v1450 = vmul.f32 %v1411, 1.442695
        %v1451 = vpow.pop %v1450
        %v1452 = vmul.f32 %v1412, 1.442695
        %v1453 = vpow.pop %v1452
        %v1454 = vmul.f32 %v1413, 1.442695
        %v1455 = vpow.pop %v1454
        %v1456 = vmul.f32 %v1414, 1.442695
        %v1457 = vpow.pop %v1456
        %v1458 = vmul.f32 %v1415, 1.442695
        %v1459 = vpow.pop %v1458
        %v1460 = vmul.f32 %v1416, 1.442695
        %v1461 = vpow.pop %v1460
        %v1462 = vmul.f32 %v1417, 1.442695
        %v1463 = vpow.pop %v1462
        %v1464 = vmul.f32 %v1418, 1.442695
        %v1465 = vpow.pop %v1464
        %v1466 = vmul.f32 %v1419, 1.442695
        %v1467 = vpow.pop %v1466
        %v1468 = vmul.f32 %v1420, 1.442695
        %v1469 = vpow.pop %v1468
        %v1470 = vmul.f32 %v1421, 1.442695
        %v1471 = vpow.pop %v1470
        %v1472 = vmul.f32 %v1422, 1.442695
        %v1473 = vpow.pop %v1472
        %v1474 = vmul.f32 %v1423, 1.442695
        %v1475 = vpow.pop %v1474
        %v1476 = vmul.f32 %v1424, 1.442695
        %v1477 = vpow.pop %v1476
        %v1478 = vmul.f32 %v1425, 1.442695
        %v1479 = vpow.pop %v1478
        %v1480 = vmul.f32 %v1426, 1.442695
        %v1481 = vpow.pop %v1480
        %v1482 = vmul.f32 %v1427, 1.442695
        %v1483 = vpow.pop %v1482
        %v1484 = vmul.f32 %v1428, 1.442695
        %v1485 = vpow.pop %v1484
        %v1486 = vmul.f32 %v1429, 1.442695
        %v1487 = vpow.pop %v1486
        %v1488 = vmul.f32 %v1430, 1.442695
        %v1489 = vpow.pop %v1488
        %v1490 = vmul.f32 %v1431, 1.442695
        %v1491 = vpow.pop %v1490
        %v1492 = vmul.f32 %v1432, 1.442695
        %v1493 = vpow.pop %v1492
        %v1494 = vmul.f32 %v1433, 1.442695
        %v1495 = vpow.pop %v1494
        %v1496 = vmul.f32 %v1434, 1.442695
        %v1497 = vpow.pop %v1496
        %v1498 = vmul.f32 %v1435, 1.442695
        %v1499 = vpow.pop %v1498
        %v1500 = vadd.f32 %v1437, 1.0
        %v1501 = vadd.f32 %v1439, 1.0
        %v1502 = vadd.f32 %v1441, 1.0
        %v1503 = vadd.f32 %v1443, 1.0
        %v1504 = vadd.f32 %v1445, 1.0
        %v1505 = vadd.f32 %v1447, 1.0
        %v1506 = vadd.f32 %v1449, 1.0
        %v1507 = vadd.f32 %v1451, 1.0
        %v1508 = vadd.f32 %v1453, 1.0
        %v1509 = vadd.f32 %v1455, 1.0
        %v1510 = vadd.f32 %v1457, 1.0
        %v1511 = vadd.f32 %v1459, 1.0
        %v1512 = vadd.f32 %v1461, 1.0
        %v1513 = vadd.f32 %v1463, 1.0
        %v1514 = vadd.f32 %v1465, 1.0
        %v1515 = vadd.f32 %v1467, 1.0
        %v1516 = vadd.f32 %v1469, 1.0
        %v1517 = vadd.f32 %v1471, 1.0
        %v1518 = vadd.f32 %v1473, 1.0
        %v1519 = vadd.f32 %v1475, 1.0
        %v1520 = vadd.f32 %v1477, 1.0
        %v1521 = vadd.f32 %v1479, 1.0
        %v1522 = vadd.f32 %v1481, 1.0
        %v1523 = vadd.f32 %v1483, 1.0
        %v1524 = vadd.f32 %v1485, 1.0
        %v1525 = vadd.f32 %v1487, 1.0
        %v1526 = vadd.f32 %v1489, 1.0
        %v1527 = vadd.f32 %v1491, 1.0
        %v1528 = vadd.f32 %v1493, 1.0
        %v1529 = vadd.f32 %v1495, 1.0
        %v1530 = vadd.f32 %v1497, 1.0
        %v1531 = vadd.f32 %v1499, 1.0
        %v1532 = vrcp.pop %v1500
        %v1533 = vmul.f32 1.0, %v1532
        %v1534 = vrcp.pop %v1501
        %v1535 = vmul.f32 1.0, %v1534
        %v1536 = vrcp.pop %v1502
        %v1537 = vmul.f32 1.0, %v1536
        %v1538 = vrcp.pop %v1503
        %v1539 = vmul.f32 1.0, %v1538
        %v1540 = vrcp.pop %v1504
        %v1541 = vmul.f32 1.0, %v1540
        %v1542 = vrcp.pop %v1505
        %v1543 = vmul.f32 1.0, %v1542
        %v1544 = vrcp.pop %v1506
        %v1545 = vmul.f32 1.0, %v1544
        %v1546 = vrcp.pop %v1507
        %v1547 = vmul.f32 1.0, %v1546
        %v1548 = vrcp.pop %v1508
        %v1549 = vmul.f32 1.0, %v1548
        %v1550 = vrcp.pop %v1509
        %v1551 = vmul.f32 1.0, %v1550
        %v1552 = vrcp.pop %v1510
        %v1553 = vmul.f32 1.0, %v1552
        %v1554 = vrcp.pop %v1511
        %v1555 = vmul.f32 1.0, %v1554
        %v1556 = vrcp.pop %v1512
        %v1557 = vmul.f32 1.0, %v1556
        %v1558 = vrcp.pop %v1513
        %v1559 = vmul.f32 1.0, %v1558
        %v1560 = vrcp.pop %v1514
        %v1561 = vmul.f32 1.0, %v1560
        %v1562 = vrcp.pop %v1515
        %v1563 = vmul.f32 1.0, %v1562
        %v1564 = vrcp.pop %v1516
        %v1565 = vmul.f32 1.0, %v1564
        %v1566 = vrcp.pop %v1517
        %v1567 = vmul.f32 1.0, %v1566
        %v1568 = vrcp.pop %v1518
        %v1569 = vmul.f32 1.0, %v1568
        %v1570 = vrcp.pop %v1519
        %v1571 = vmul.f32 1.0, %v1570
        %v1572 = vrcp.pop %v1520
        %v1573 = vmul.f32 1.0, %v1572
        %v1574 = vrcp.pop %v1521
        %v1575 = vmul.f32 1.0, %v1574
        %v1576 = vrcp.pop %v1522
        %v1577 = vmul.f32 1.0, %v1576
        %v1578 = vrcp.pop %v1523
        %v1579 = vmul.f32 1.0, %v1578
        %v1580 = vrcp.pop %v1524
        %v1581 = vmul.f32 1.0, %v1580
        %v1582 = vrcp.pop %v1525
        %v1583 = vmul.f32 1.0, %v1582
        %v1584 = vrcp.pop %v1526
        %v1585 = vmul.f32 1.0, %v1584
        %v1586 = vrcp.pop %v1527
        %v1587 = vmul.f32 1.0, %v1586
        %v1588 = vrcp.pop %v1528
        %v1589 = vmul.f32 1.0, %v1588
        %v1590 = vrcp.pop %v1529
        %v1591 = vmul.f32 1.0, %v1590
        %v1592 = vrcp.pop %v1530
        %v1593 = vmul.f32 1.0, %v1592
        %v1594 = vrcp.pop %v1531
        %v1595 = vmul.f32 1.0, %v1594
        %1596 = vst [vmem:[%s253 + $0x18] sm:$0xff] %v1533
        %1597 = vst [vmem:[%s253 + $0x58] sm:$0xff] %v1535
        %1598 = vst [vmem:[%s253 + $0x98] sm:$0xff] %v1537
        %1599 = vst [vmem:[%s253 + $0xd8] sm:$0xff] %v1539
        %1600 = vst [vmem:[%s253 + $0x118] sm:$0xff] %v1541
        %1601 = vst [vmem:[%s253 + $0x158] sm:$0xff] %v1543
        %1602 = vst [vmem:[%s253 + $0x198] sm:$0xff] %v1545
        %1603 = vst [vmem:[%s253 + $0x1d8] sm:$0xff] %v1547
        %1604 = vst [vmem:[%s253 + $0x218] sm:$0xff] %v1549
        %1605 = vst [vmem:[%s253 + $0x258] sm:$0xff] %v1551
        %1606 = vst [vmem:[%s253 + $0x298] sm:$0xff] %v1553
        %1607 = vst [vmem:[%s253 + $0x2d8] sm:$0xff] %v1555
        %1608 = vst [vmem:[%s253 + $0x318] sm:$0xff] %v1557
        %1609 = vst [vmem:[%s253 + $0x358] sm:$0xff] %v1559
        %1610 = vst [vmem:[%s253 + $0x398] sm:$0xff] %v1561
        %1611 = vst [vmem:[%s253 + $0x3d8] sm:$0xff] %v1563
        %1612 = vst [vmem:[%s253 + $0x418] sm:$0xff] %v1565
        %1613 = vst [vmem:[%s253 + $0x458] sm:$0xff] %v1567
        %1614 = vst [vmem:[%s253 + $0x498] sm:$0xff] %v1569
        %1615 = vst [vmem:[%s253 + $0x4d8] sm:$0xff] %v1571
        %1616 = vst [vmem:[%s253 + $0x518] sm:$0xff] %v1573
        %1617 = vst [vmem:[%s253 + $0x558] sm:$0xff] %v1575
        %1618 = vst [vmem:[%s253 + $0x598] sm:$0xff] %v1577
        %1619 = vst [vmem:[%s253 + $0x5d8] sm:$0xff] %v1579
        %1620 = vst [vmem:[%s253 + $0x618] sm:$0xff] %v1581
        %1621 = vst [vmem:[%s253 + $0x658] sm:$0xff] %v1583
        %1622 = vst [vmem:[%s253 + $0x698] sm:$0xff] %v1585
        %1623 = vst [vmem:[%s253 + $0x6d8] sm:$0xff] %v1587
        %1624 = vst [vmem:[%s253 + $0x718] sm:$0xff] %v1589
        %1625 = vst [vmem:[%s253 + $0x758] sm:$0xff] %v1591
        %1626 = vst [vmem:[%s253 + $0x798] sm:$0xff] %v1593
        %1627 = vst [vmem:[%s253 + $0x7d8] sm:$0xff] %v1595
        %v1628 = vld [vmem:[#allocation5 + $0x4] sm:$0x1]
        %v1629 = vld [vmem:[#allocation7 + $0x4] sm:$0x1]
        %v1630 = vld [vmem:[#allocation8 + $0x4] sm:$0x1]
        %v1631 = vlaneseq
        %v1632 = vshrl.u32 %v1631, 7
        %v1633 = vsub.s32 0, %v1632
        %v1634 = vrot.slane %v1628, %v1633
        %v1635 = vmul.f32 %v256, %v1634
        %v1636 = vmul.f32 %v257, %v1634
        %v1637 = vmul.f32 %v258, %v1634
        %v1638 = vmul.f32 %v259, %v1634
        %v1639 = vmul.f32 %v260, %v1634
        %v1640 = vmul.f32 %v261, %v1634
        %v1641 = vmul.f32 %v262, %v1634
        %v1642 = vmul.f32 %v263, %v1634
        %v1643 = vmul.f32 %v264, %v1634
        %v1644 = vmul.f32 %v265, %v1634
        %v1645 = vmul.f32 %v266, %v1634
        %v1646 = vmul.f32 %v267, %v1634
        %v1647 = vmul.f32 %v268, %v1634
        %v1648 = vmul.f32 %v269, %v1634
        %v1649 = vmul.f32 %v270, %v1634
        %v1650 = vmul.f32 %v271, %v1634
        %v1651 = vmul.f32 %v272, %v1634
        %v1652 = vmul.f32 %v273, %v1634
        %v1653 = vmul.f32 %v274, %v1634
        %v1654 = vmul.f32 %v275, %v1634
        %v1655 = vmul.f32 %v276, %v1634
        %v1656 = vmul.f32 %v277, %v1634
        %v1657 = vmul.f32 %v278, %v1634
        %v1658 = vmul.f32 %v279, %v1634
        %v1659 = vmul.f32 %v280, %v1634
        %v1660 = vmul.f32 %v281, %v1634
        %v1661 = vmul.f32 %v282, %v1634
        %v1662 = vmul.f32 %v283, %v1634
        %v1663 = vmul.f32 %v284, %v1634
        %v1664 = vmul.f32 %v285, %v1634
        %v1665 = vmul.f32 %v286, %v1634
        %v1666 = vmul.f32 %v287, %v1634
        %v1667 = vlaneseq
        %v1668 = vshrl.u32 %v1667, 7
        %v1669 = vsub.s32 0, %v1668
        %v1670 = vrot.slane %v1629, %v1669
        %v1671 = vsub.f32 %v1635, %v1670
        %v1672 = vsub.f32 %v1636, %v1670
        %v1673 = vsub.f32 %v1637, %v1670
        %v1674 = vsub.f32 %v1638, %v1670
        %v1675 = vsub.f32 %v1639, %v1670
        %v1676 = vsub.f32 %v1640, %v1670
        %v1677 = vsub.f32 %v1641, %v1670
        %v1678 = vsub.f32 %v1642, %v1670
        %v1679 = vsub.f32 %v1643, %v1670
        %v1680 = vsub.f32 %v1644, %v1670
        %v1681 = vsub.f32 %v1645, %v1670
        %v1682 = vsub.f32 %v1646, %v1670
        %v1683 = vsub.f32 %v1647, %v1670
        %v1684 = vsub.f32 %v1648, %v1670
        %v1685 = vsub.f32 %v1649, %v1670
        %v1686 = vsub.f32 %v1650, %v1670
        %v1687 = vsub.f32 %v1651, %v1670
        %v1688 = vsub.f32 %v1652, %v1670
        %v1689 = vsub.f32 %v1653, %v1670
        %v1690 = vsub.f32 %v1654, %v1670
        %v1691 = vsub.f32 %v1655, %v1670
        %v1692 = vsub.f32 %v1656, %v1670
        %v1693 = vsub.f32 %v1657, %v1670
        %v1694 = vsub.f32 %v1658, %v1670
        %v1695 = vsub.f32 %v1659, %v1670
        %v1696 = vsub.f32 %v1660, %v1670
        %v1697 = vsub.f32 %v1661, %v1670
        %v1698 = vsub.f32 %v1662, %v1670
        %v1699 = vsub.f32 %v1663, %v1670
        %v1700 = vsub.f32 %v1664, %v1670
        %v1701 = vsub.f32 %v1665, %v1670
        %v1702 = vsub.f32 %v1666, %v1670
        %v1703 = vlaneseq
        %v1704 = vshrl.u32 %v1703, 7
        %v1705 = vsub.s32 0, %v1704
        %v1706 = vrot.slane %v1630, %v1705
        %v1707 = vmul.f32 %v1706, %v1671
        %v1708 = vmul.f32 %v1706, %v1672
        %v1709 = vmul.f32 %v1706, %v1673
        %v1710 = vmul.f32 %v1706, %v1674
        %v1711 = vmul.f32 %v1706, %v1675
        %v1712 = vmul.f32 %v1706, %v1676
        %v1713 = vmul.f32 %v1706, %v1677
        %v1714 = vmul.f32 %v1706, %v1678
        %v1715 = vmul.f32 %v1706, %v1679
        %v1716 = vmul.f32 %v1706, %v1680
        %v1717 = vmul.f32 %v1706, %v1681
        %v1718 = vmul.f32 %v1706, %v1682
        %v1719 = vmul.f32 %v1706, %v1683
        %v1720 = vmul.f32 %v1706, %v1684
        %v1721 = vmul.f32 %v1706, %v1685
        %v1722 = vmul.f32 %v1706, %v1686
        %v1723 = vmul.f32 %v1706, %v1687
        %v1724 = vmul.f32 %v1706, %v1688
        %v1725 = vmul.f32 %v1706, %v1689
        %v1726 = vmul.f32 %v1706, %v1690
        %v1727 = vmul.f32 %v1706, %v1691
        %v1728 = vmul.f32 %v1706, %v1692
        %v1729 = vmul.f32 %v1706, %v1693
        %v1730 = vmul.f32 %v1706, %v1694
        %v1731 = vmul.f32 %v1706, %v1695
        %v1732 = vmul.f32 %v1706, %v1696
        %v1733 = vmul.f32 %v1706, %v1697
        %v1734 = vmul.f32 %v1706, %v1698
        %v1735 = vmul.f32 %v1706, %v1699
        %v1736 = vmul.f32 %v1706, %v1700
        %v1737 = vmul.f32 %v1706, %v1701
        %v1738 = vmul.f32 %v1706, %v1702
        %v1739 = vsub.f32 0.0, %v1707
        %v1740 = vsub.f32 0.0, %v1708
        %v1741 = vsub.f32 0.0, %v1709
        %v1742 = vsub.f32 0.0, %v1710
        %v1743 = vsub.f32 0.0, %v1711
        %v1744 = vsub.f32 0.0, %v1712
        %v1745 = vsub.f32 0.0, %v1713
        %v1746 = vsub.f32 0.0, %v1714
        %v1747 = vsub.f32 0.0, %v1715
        %v1748 = vsub.f32 0.0, %v1716
        %v1749 = vsub.f32 0.0, %v1717
        %v1750 = vsub.f32 0.0, %v1718
        %v1751 = vsub.f32 0.0, %v1719
        %v1752 = vsub.f32 0.0, %v1720
        %v1753 = vsub.f32 0.0, %v1721
        %v1754 = vsub.f32 0.0, %v1722
        %v1755 = vsub.f32 0.0, %v1723
        %v1756 = vsub.f32 0.0, %v1724
        %v1757 = vsub.f32 0.0, %v1725
        %v1758 = vsub.f32 0.0, %v1726
        %v1759 = vsub.f32 0.0, %v1727
        %v1760 = vsub.f32 0.0, %v1728
        %v1761 = vsub.f32 0.0, %v1729
        %v1762 = vsub.f32 0.0, %v1730
        %v1763 = vsub.f32 0.0, %v1731
        %v1764 = vsub.f32 0.0, %v1732
        %v1765 = vsub.f32 0.0, %v1733
        %v1766 = vsub.f32 0.0, %v1734
        %v1767 = vsub.f32 0.0, %v1735
        %v1768 = vsub.f32 0.0, %v1736
        %v1769 = vsub.f32 0.0, %v1737
        %v1770 = vsub.f32 0.0, %v1738
        %v1771 = vmul.f32 %v1739, 1.442695
        %v1772 = vpow.pop %v1771
        %v1773 = vmul.f32 %v1740, 1.442695
        %v1774 = vpow.pop %v1773
        %v1775 = vmul.f32 %v1741, 1.442695
        %v1776 = vpow.pop %v1775
        %v1777 = vmul.f32 %v1742, 1.442695
        %v1778 = vpow.pop %v1777
        %v1779 = vmul.f32 %v1743, 1.442695
        %v1780 = vpow.pop %v1779
        %v1781 = vmul.f32 %v1744, 1.442695
        %v1782 = vpow.pop %v1781
        %v1783 = vmul.f32 %v1745, 1.442695
        %v1784 = vpow.pop %v1783
        %v1785 = vmul.f32 %v1746, 1.442695
        %v1786 = vpow.pop %v1785
        %v1787 = vmul.f32 %v1747, 1.442695
        %v1788 = vpow.pop %v1787
        %v1789 = vmul.f32 %v1748, 1.442695
        %v1790 = vpow.pop %v1789
        %v1791 = vmul.f32 %v1749, 1.442695
        %v1792 = vpow.pop %v1791
        %v1793 = vmul.f32 %v1750, 1.442695
        %v1794 = vpow.pop %v1793
        %v1795 = vmul.f32 %v1751, 1.442695
        %v1796 = vpow.pop %v1795
        %v1797 = vmul.f32 %v1752, 1.442695
        %v1798 = vpow.pop %v1797
        %v1799 = vmul.f32 %v1753, 1.442695
        %v1800 = vpow.pop %v1799
        %v1801 = vmul.f32 %v1754, 1.442695
        %v1802 = vpow.pop %v1801
        %v1803 = vmul.f32 %v1755, 1.442695
        %v1804 = vpow.pop %v1803
        %v1805 = vmul.f32 %v1756, 1.442695
        %v1806 = vpow.pop %v1805
        %v1807 = vmul.f32 %v1757, 1.442695
        %v1808 = vpow.pop %v1807
        %v1809 = vmul.f32 %v1758, 1.442695
        %v1810 = vpow.pop %v1809
        %v1811 = vmul.f32 %v1759, 1.442695
        %v1812 = vpow.pop %v1811
        %v1813 = vmul.f32 %v1760, 1.442695
        %v1814 = vpow.pop %v1813
        %v1815 = vmul.f32 %v1761, 1.442695
        %v1816 = vpow.pop %v1815
        %v1817 = vmul.f32 %v1762, 1.442695
        %v1818 = vpow.pop %v1817
        %v1819 = vmul.f32 %v1763, 1.442695
        %v1820 = vpow.pop %v1819
        %v1821 = vmul.f32 %v1764, 1.442695
        %v1822 = vpow.pop %v1821
        %v1823 = vmul.f32 %v1765, 1.442695
        %v1824 = vpow.pop %v1823
        %v1825 = vmul.f32 %v1766, 1.442695
        %v1826 = vpow.pop %v1825
        %v1827 = vmul.f32 %v1767, 1.442695
        %v1828 = vpow.pop %v1827
        %v1829 = vmul.f32 %v1768, 1.442695
        %v1830 = vpow.pop %v1829
        %v1831 = vmul.f32 %v1769, 1.442695
        %v1832 = vpow.pop %v1831
        %v1833 = vmul.f32 %v1770, 1.442695
        %v1834 = vpow.pop %v1833
        %v1835 = vadd.f32 %v1772, 1.0
        %v1836 = vadd.f32 %v1774, 1.0
        %v1837 = vadd.f32 %v1776, 1.0
        %v1838 = vadd.f32 %v1778, 1.0
        %v1839 = vadd.f32 %v1780, 1.0
        %v1840 = vadd.f32 %v1782, 1.0
        %v1841 = vadd.f32 %v1784, 1.0
        %v1842 = vadd.f32 %v1786, 1.0
        %v1843 = vadd.f32 %v1788, 1.0
        %v1844 = vadd.f32 %v1790, 1.0
        %v1845 = vadd.f32 %v1792, 1.0
        %v1846 = vadd.f32 %v1794, 1.0
        %v1847 = vadd.f32 %v1796, 1.0
        %v1848 = vadd.f32 %v1798, 1.0
        %v1849 = vadd.f32 %v1800, 1.0
        %v1850 = vadd.f32 %v1802, 1.0
        %v1851 = vadd.f32 %v1804, 1.0
        %v1852 = vadd.f32 %v1806, 1.0
        %v1853 = vadd.f32 %v1808, 1.0
        %v1854 = vadd.f32 %v1810, 1.0
        %v1855 = vadd.f32 %v1812, 1.0
        %v1856 = vadd.f32 %v1814, 1.0
        %v1857 = vadd.f32 %v1816, 1.0
        %v1858 = vadd.f32 %v1818, 1.0
        %v1859 = vadd.f32 %v1820, 1.0
        %v1860 = vadd.f32 %v1822, 1.0
        %v1861 = vadd.f32 %v1824, 1.0
        %v1862 = vadd.f32 %v1826, 1.0
        %v1863 = vadd.f32 %v1828, 1.0
        %v1864 = vadd.f32 %v1830, 1.0
        %v1865 = vadd.f32 %v1832, 1.0
        %v1866 = vadd.f32 %v1834, 1.0
        %v1867 = vrcp.pop %v1835
        %v1868 = vmul.f32 1.0, %v1867
        %v1869 = vrcp.pop %v1836
        %v1870 = vmul.f32 1.0, %v1869
        %v1871 = vrcp.pop %v1837
        %v1872 = vmul.f32 1.0, %v1871
        %v1873 = vrcp.pop %v1838
        %v1874 = vmul.f32 1.0, %v1873
        %v1875 = vrcp.pop %v1839
        %v1876 = vmul.f32 1.0, %v1875
        %v1877 = vrcp.pop %v1840
        %v1878 = vmul.f32 1.0, %v1877
        %v1879 = vrcp.pop %v1841
        %v1880 = vmul.f32 1.0, %v1879
        %v1881 = vrcp.pop %v1842
        %v1882 = vmul.f32 1.0, %v1881
        %v1883 = vrcp.pop %v1843
        %v1884 = vmul.f32 1.0, %v1883
        %v1885 = vrcp.pop %v1844
        %v1886 = vmul.f32 1.0, %v1885
        %v1887 = vrcp.pop %v1845
        %v1888 = vmul.f32 1.0, %v1887
        %v1889 = vrcp.pop %v1846
        %v1890 = vmul.f32 1.0, %v1889
        %v1891 = vrcp.pop %v1847
        %v1892 = vmul.f32 1.0, %v1891
        %v1893 = vrcp.pop %v1848
        %v1894 = vmul.f32 1.0, %v1893
        %v1895 = vrcp.pop %v1849
        %v1896 = vmul.f32 1.0, %v1895
        %v1897 = vrcp.pop %v1850
        %v1898 = vmul.f32 1.0, %v1897
        %v1899 = vrcp.pop %v1851
        %v1900 = vmul.f32 1.0, %v1899
        %v1901 = vrcp.pop %v1852
        %v1902 = vmul.f32 1.0, %v1901
        %v1903 = vrcp.pop %v1853
        %v1904 = vmul.f32 1.0, %v1903
        %v1905 = vrcp.pop %v1854
        %v1906 = vmul.f32 1.0, %v1905
        %v1907 = vrcp.pop %v1855
        %v1908 = vmul.f32 1.0, %v1907
        %v1909 = vrcp.pop %v1856
        %v1910 = vmul.f32 1.0, %v1909
        %v1911 = vrcp.pop %v1857
        %v1912 = vmul.f32 1.0, %v1911
        %v1913 = vrcp.pop %v1858
        %v1914 = vmul.f32 1.0, %v1913
        %v1915 = vrcp.pop %v1859
        %v1916 = vmul.f32 1.0, %v1915
        %v1917 = vrcp.pop %v1860
        %v1918 = vmul.f32 1.0, %v1917
        %v1919 = vrcp.pop %v1861
        %v1920 = vmul.f32 1.0, %v1919
        %v1921 = vrcp.pop %v1862
        %v1922 = vmul.f32 1.0, %v1921
        %v1923 = vrcp.pop %v1863
        %v1924 = vmul.f32 1.0, %v1923
        %v1925 = vrcp.pop %v1864
        %v1926 = vmul.f32 1.0, %v1925
        %v1927 = vrcp.pop %v1865
        %v1928 = vmul.f32 1.0, %v1927
        %v1929 = vrcp.pop %v1866
        %v1930 = vmul.f32 1.0, %v1929
        %1931 = vst [vmem:[%s253 + $0x20] sm:$0xff] %v1868
        %1932 = vst [vmem:[%s253 + $0x60] sm:$0xff] %v1870
        %1933 = vst [vmem:[%s253 + $0xa0] sm:$0xff] %v1872
        %1934 = vst [vmem:[%s253 + $0xe0] sm:$0xff] %v1874
        %1935 = vst [vmem:[%s253 + $0x120] sm:$0xff] %v1876
        %1936 = vst [vmem:[%s253 + $0x160] sm:$0xff] %v1878
        %1937 = vst [vmem:[%s253 + $0x1a0] sm:$0xff] %v1880
        %1938 = vst [vmem:[%s253 + $0x1e0] sm:$0xff] %v1882
        %1939 = vst [vmem:[%s253 + $0x220] sm:$0xff] %v1884
        %1940 = vst [vmem:[%s253 + $0x260] sm:$0xff] %v1886
        %1941 = vst [vmem:[%s253 + $0x2a0] sm:$0xff] %v1888
        %1942 = vst [vmem:[%s253 + $0x2e0] sm:$0xff] %v1890
        %1943 = vst [vmem:[%s253 + $0x320] sm:$0xff] %v1892
        %1944 = vst [vmem:[%s253 + $0x360] sm:$0xff] %v1894
        %1945 = vst [vmem:[%s253 + $0x3a0] sm:$0xff] %v1896
        %1946 = vst [vmem:[%s253 + $0x3e0] sm:$0xff] %v1898
        %1947 = vst [vmem:[%s253 + $0x420] sm:$0xff] %v1900
        %1948 = vst [vmem:[%s253 + $0x460] sm:$0xff] %v1902
        %1949 = vst [vmem:[%s253 + $0x4a0] sm:$0xff] %v1904
        %1950 = vst [vmem:[%s253 + $0x4e0] sm:$0xff] %v1906
        %1951 = vst [vmem:[%s253 + $0x520] sm:$0xff] %v1908
        %1952 = vst [vmem:[%s253 + $0x560] sm:$0xff] %v1910
        %1953 = vst [vmem:[%s253 + $0x5a0] sm:$0xff] %v1912
        %1954 = vst [vmem:[%s253 + $0x5e0] sm:$0xff] %v1914
        %1955 = vst [vmem:[%s253 + $0x620] sm:$0xff] %v1916
        %1956 = vst [vmem:[%s253 + $0x660] sm:$0xff] %v1918
        %1957 = vst [vmem:[%s253 + $0x6a0] sm:$0xff] %v1920
        %1958 = vst [vmem:[%s253 + $0x6e0] sm:$0xff] %v1922
        %1959 = vst [vmem:[%s253 + $0x720] sm:$0xff] %v1924
        %1960 = vst [vmem:[%s253 + $0x760] sm:$0xff] %v1926
        %1961 = vst [vmem:[%s253 + $0x7a0] sm:$0xff] %v1928
        %1962 = vst [vmem:[%s253 + $0x7e0] sm:$0xff] %v1930
        %v1963 = vld [vmem:[#allocation5 + $0x5] sm:$0x1]
        %v1964 = vld [vmem:[#allocation7 + $0x5] sm:$0x1]
        %v1965 = vld [vmem:[#allocation8 + $0x5] sm:$0x1]
        %v1966 = vlaneseq
        %v1967 = vshrl.u32 %v1966, 7
        %v1968 = vsub.s32 0, %v1967
        %v1969 = vrot.slane %v1963, %v1968
        %v1970 = vmul.f32 %v256, %v1969
        %v1971 = vmul.f32 %v257, %v1969
        %v1972 = vmul.f32 %v258, %v1969
        %v1973 = vmul.f32 %v259, %v1969
        %v1974 = vmul.f32 %v260, %v1969
        %v1975 = vmul.f32 %v261, %v1969
        %v1976 = vmul.f32 %v262, %v1969
        %v1977 = vmul.f32 %v263, %v1969
        %v1978 = vmul.f32 %v264, %v1969
        %v1979 = vmul.f32 %v265, %v1969
        %v1980 = vmul.f32 %v266, %v1969
        %v1981 = vmul.f32 %v267, %v1969
        %v1982 = vmul.f32 %v268, %v1969
        %v1983 = vmul.f32 %v269, %v1969
        %v1984 = vmul.f32 %v270, %v1969
        %v1985 = vmul.f32 %v271, %v1969
        %v1986 = vmul.f32 %v272, %v1969
        %v1987 = vmul.f32 %v273, %v1969
        %v1988 = vmul.f32 %v274, %v1969
        %v1989 = vmul.f32 %v275, %v1969
        %v1990 = vmul.f32 %v276, %v1969
        %v1991 = vmul.f32 %v277, %v1969
        %v1992 = vmul.f32 %v278, %v1969
        %v1993 = vmul.f32 %v279, %v1969
        %v1994 = vmul.f32 %v280, %v1969
        %v1995 = vmul.f32 %v281, %v1969
        %v1996 = vmul.f32 %v282, %v1969
        %v1997 = vmul.f32 %v283, %v1969
        %v1998 = vmul.f32 %v284, %v1969
        %v1999 = vmul.f32 %v285, %v1969
        %v2000 = vmul.f32 %v286, %v1969
        %v2001 = vmul.f32 %v287, %v1969
        %v2002 = vlaneseq
        %v2003 = vshrl.u32 %v2002, 7
        %v2004 = vsub.s32 0, %v2003
        %v2005 = vrot.slane %v1964, %v2004
        %v2006 = vsub.f32 %v1970, %v2005
        %v2007 = vsub.f32 %v1971, %v2005
        %v2008 = vsub.f32 %v1972, %v2005
        %v2009 = vsub.f32 %v1973, %v2005
        %v2010 = vsub.f32 %v1974, %v2005
        %v2011 = vsub.f32 %v1975, %v2005
        %v2012 = vsub.f32 %v1976, %v2005
        %v2013 = vsub.f32 %v1977, %v2005
        %v2014 = vsub.f32 %v1978, %v2005
        %v2015 = vsub.f32 %v1979, %v2005
        %v2016 = vsub.f32 %v1980, %v2005
        %v2017 = vsub.f32 %v1981, %v2005
        %v2018 = vsub.f32 %v1982, %v2005
        %v2019 = vsub.f32 %v1983, %v2005
        %v2020 = vsub.f32 %v1984, %v2005
        %v2021 = vsub.f32 %v1985, %v2005
        %v2022 = vsub.f32 %v1986, %v2005
        %v2023 = vsub.f32 %v1987, %v2005
        %v2024 = vsub.f32 %v1988, %v2005
        %v2025 = vsub.f32 %v1989, %v2005
        %v2026 = vsub.f32 %v1990, %v2005
        %v2027 = vsub.f32 %v1991, %v2005
        %v2028 = vsub.f32 %v1992, %v2005
        %v2029 = vsub.f32 %v1993, %v2005
        %v2030 = vsub.f32 %v1994, %v2005
        %v2031 = vsub.f32 %v1995, %v2005
        %v2032 = vsub.f32 %v1996, %v2005
        %v2033 = vsub.f32 %v1997, %v2005
        %v2034 = vsub.f32 %v1998, %v2005
        %v2035 = vsub.f32 %v1999, %v2005
        %v2036 = vsub.f32 %v2000, %v2005
        %v2037 = vsub.f32 %v2001, %v2005
        %v2038 = vlaneseq
        %v2039 = vshrl.u32 %v2038, 7
        %v2040 = vsub.s32 0, %v2039
        %v2041 = vrot.slane %v1965, %v2040
        %v2042 = vmul.f32 %v2041, %v2006
        %v2043 = vmul.f32 %v2041, %v2007
        %v2044 = vmul.f32 %v2041, %v2008
        %v2045 = vmul.f32 %v2041, %v2009
        %v2046 = vmul.f32 %v2041, %v2010
        %v2047 = vmul.f32 %v2041, %v2011
        %v2048 = vmul.f32 %v2041, %v2012
        %v2049 = vmul.f32 %v2041, %v2013
        %v2050 = vmul.f32 %v2041, %v2014
        %v2051 = vmul.f32 %v2041, %v2015
        %v2052 = vmul.f32 %v2041, %v2016
        %v2053 = vmul.f32 %v2041, %v2017
        %v2054 = vmul.f32 %v2041, %v2018
        %v2055 = vmul.f32 %v2041, %v2019
        %v2056 = vmul.f32 %v2041, %v2020
        %v2057 = vmul.f32 %v2041, %v2021
        %v2058 = vmul.f32 %v2041, %v2022
        %v2059 = vmul.f32 %v2041, %v2023
        %v2060 = vmul.f32 %v2041, %v2024
        %v2061 = vmul.f32 %v2041, %v2025
        %v2062 = vmul.f32 %v2041, %v2026
        %v2063 = vmul.f32 %v2041, %v2027
        %v2064 = vmul.f32 %v2041, %v2028
        %v2065 = vmul.f32 %v2041, %v2029
        %v2066 = vmul.f32 %v2041, %v2030
        %v2067 = vmul.f32 %v2041, %v2031
        %v2068 = vmul.f32 %v2041, %v2032
        %v2069 = vmul.f32 %v2041, %v2033
        %v2070 = vmul.f32 %v2041, %v2034
        %v2071 = vmul.f32 %v2041, %v2035
        %v2072 = vmul.f32 %v2041, %v2036
        %v2073 = vmul.f32 %v2041, %v2037
        %v2074 = vsub.f32 0.0, %v2042
        %v2075 = vsub.f32 0.0, %v2043
        %v2076 = vsub.f32 0.0, %v2044
        %v2077 = vsub.f32 0.0, %v2045
        %v2078 = vsub.f32 0.0, %v2046
        %v2079 = vsub.f32 0.0, %v2047
        %v2080 = vsub.f32 0.0, %v2048
        %v2081 = vsub.f32 0.0, %v2049
        %v2082 = vsub.f32 0.0, %v2050
        %v2083 = vsub.f32 0.0, %v2051
        %v2084 = vsub.f32 0.0, %v2052
        %v2085 = vsub.f32 0.0, %v2053
        %v2086 = vsub.f32 0.0, %v2054
        %v2087 = vsub.f32 0.0, %v2055
        %v2088 = vsub.f32 0.0, %v2056
        %v2089 = vsub.f32 0.0, %v2057
        %v2090 = vsub.f32 0.0, %v2058
        %v2091 = vsub.f32 0.0, %v2059
        %v2092 = vsub.f32 0.0, %v2060
        %v2093 = vsub.f32 0.0, %v2061
        %v2094 = vsub.f32 0.0, %v2062
        %v2095 = vsub.f32 0.0, %v2063
        %v2096 = vsub.f32 0.0, %v2064
        %v2097 = vsub.f32 0.0, %v2065
        %v2098 = vsub.f32 0.0, %v2066
        %v2099 = vsub.f32 0.0, %v2067
        %v2100 = vsub.f32 0.0, %v2068
        %v2101 = vsub.f32 0.0, %v2069
        %v2102 = vsub.f32 0.0, %v2070
        %v2103 = vsub.f32 0.0, %v2071
        %v2104 = vsub.f32 0.0, %v2072
        %v2105 = vsub.f32 0.0, %v2073
        %v2106 = vmul.f32 %v2074, 1.442695
        %v2107 = vpow.pop %v2106
        %v2108 = vmul.f32 %v2075, 1.442695
        %v2109 = vpow.pop %v2108
        %v2110 = vmul.f32 %v2076, 1.442695
        %v2111 = vpow.pop %v2110
        %v2112 = vmul.f32 %v2077, 1.442695
        %v2113 = vpow.pop %v2112
        %v2114 = vmul.f32 %v2078, 1.442695
        %v2115 = vpow.pop %v2114
        %v2116 = vmul.f32 %v2079, 1.442695
        %v2117 = vpow.pop %v2116
        %v2118 = vmul.f32 %v2080, 1.442695
        %v2119 = vpow.pop %v2118
        %v2120 = vmul.f32 %v2081, 1.442695
        %v2121 = vpow.pop %v2120
        %v2122 = vmul.f32 %v2082, 1.442695
        %v2123 = vpow.pop %v2122
        %v2124 = vmul.f32 %v2083, 1.442695
        %v2125 = vpow.pop %v2124
        %v2126 = vmul.f32 %v2084, 1.442695
        %v2127 = vpow.pop %v2126
        %v2128 = vmul.f32 %v2085, 1.442695
        %v2129 = vpow.pop %v2128
        %v2130 = vmul.f32 %v2086, 1.442695
        %v2131 = vpow.pop %v2130
        %v2132 = vmul.f32 %v2087, 1.442695
        %v2133 = vpow.pop %v2132
        %v2134 = vmul.f32 %v2088, 1.442695
        %v2135 = vpow.pop %v2134
        %v2136 = vmul.f32 %v2089, 1.442695
        %v2137 = vpow.pop %v2136
        %v2138 = vmul.f32 %v2090, 1.442695
        %v2139 = vpow.pop %v2138
        %v2140 = vmul.f32 %v2091, 1.442695
        %v2141 = vpow.pop %v2140
        %v2142 = vmul.f32 %v2092, 1.442695
        %v2143 = vpow.pop %v2142
        %v2144 = vmul.f32 %v2093, 1.442695
        %v2145 = vpow.pop %v2144
        %v2146 = vmul.f32 %v2094, 1.442695
        %v2147 = vpow.pop %v2146
        %v2148 = vmul.f32 %v2095, 1.442695
        %v2149 = vpow.pop %v2148
        %v2150 = vmul.f32 %v2096, 1.442695
        %v2151 = vpow.pop %v2150
        %v2152 = vmul.f32 %v2097, 1.442695
        %v2153 = vpow.pop %v2152
        %v2154 = vmul.f32 %v2098, 1.442695
        %v2155 = vpow.pop %v2154
        %v2156 = vmul.f32 %v2099, 1.442695
        %v2157 = vpow.pop %v2156
        %v2158 = vmul.f32 %v2100, 1.442695
        %v2159 = vpow.pop %v2158
        %v2160 = vmul.f32 %v2101, 1.442695
        %v2161 = vpow.pop %v2160
        %v2162 = vmul.f32 %v2102, 1.442695
        %v2163 = vpow.pop %v2162
        %v2164 = vmul.f32 %v2103, 1.442695
        %v2165 = vpow.pop %v2164
        %v2166 = vmul.f32 %v2104, 1.442695
        %v2167 = vpow.pop %v2166
        %v2168 = vmul.f32 %v2105, 1.442695
        %v2169 = vpow.pop %v2168
        %v2170 = vadd.f32 %v2107, 1.0
        %v2171 = vadd.f32 %v2109, 1.0
        %v2172 = vadd.f32 %v2111, 1.0
        %v2173 = vadd.f32 %v2113, 1.0
        %v2174 = vadd.f32 %v2115, 1.0
        %v2175 = vadd.f32 %v2117, 1.0
        %v2176 = vadd.f32 %v2119, 1.0
        %v2177 = vadd.f32 %v2121, 1.0
        %v2178 = vadd.f32 %v2123, 1.0
        %v2179 = vadd.f32 %v2125, 1.0
        %v2180 = vadd.f32 %v2127, 1.0
        %v2181 = vadd.f32 %v2129, 1.0
        %v2182 = vadd.f32 %v2131, 1.0
        %v2183 = vadd.f32 %v2133, 1.0
        %v2184 = vadd.f32 %v2135, 1.0
        %v2185 = vadd.f32 %v2137, 1.0
        %v2186 = vadd.f32 %v2139, 1.0
        %v2187 = vadd.f32 %v2141, 1.0
        %v2188 = vadd.f32 %v2143, 1.0
        %v2189 = vadd.f32 %v2145, 1.0
        %v2190 = vadd.f32 %v2147, 1.0
        %v2191 = vadd.f32 %v2149, 1.0
        %v2192 = vadd.f32 %v2151, 1.0
        %v2193 = vadd.f32 %v2153, 1.0
        %v2194 = vadd.f32 %v2155, 1.0
        %v2195 = vadd.f32 %v2157, 1.0
        %v2196 = vadd.f32 %v2159, 1.0
        %v2197 = vadd.f32 %v2161, 1.0
        %v2198 = vadd.f32 %v2163, 1.0
        %v2199 = vadd.f32 %v2165, 1.0
        %v2200 = vadd.f32 %v2167, 1.0
        %v2201 = vadd.f32 %v2169, 1.0
        %v2202 = vrcp.pop %v2170
        %v2203 = vmul.f32 1.0, %v2202
        %v2204 = vrcp.pop %v2171
        %v2205 = vmul.f32 1.0, %v2204
        %v2206 = vrcp.pop %v2172
        %v2207 = vmul.f32 1.0, %v2206
        %v2208 = vrcp.pop %v2173
        %v2209 = vmul.f32 1.0, %v2208
        %v2210 = vrcp.pop %v2174
        %v2211 = vmul.f32 1.0, %v2210
        %v2212 = vrcp.pop %v2175
        %v2213 = vmul.f32 1.0, %v2212
        %v2214 = vrcp.pop %v2176
        %v2215 = vmul.f32 1.0, %v2214
        %v2216 = vrcp.pop %v2177
        %v2217 = vmul.f32 1.0, %v2216
        %v2218 = vrcp.pop %v2178
        %v2219 = vmul.f32 1.0, %v2218
        %v2220 = vrcp.pop %v2179
        %v2221 = vmul.f32 1.0, %v2220
        %v2222 = vrcp.pop %v2180
        %v2223 = vmul.f32 1.0, %v2222
        %v2224 = vrcp.pop %v2181
        %v2225 = vmul.f32 1.0, %v2224
        %v2226 = vrcp.pop %v2182
        %v2227 = vmul.f32 1.0, %v2226
        %v2228 = vrcp.pop %v2183
        %v2229 = vmul.f32 1.0, %v2228
        %v2230 = vrcp.pop %v2184
        %v2231 = vmul.f32 1.0, %v2230
        %v2232 = vrcp.pop %v2185
        %v2233 = vmul.f32 1.0, %v2232
        %v2234 = vrcp.pop %v2186
        %v2235 = vmul.f32 1.0, %v2234
        %v2236 = vrcp.pop %v2187
        %v2237 = vmul.f32 1.0, %v2236
        %v2238 = vrcp.pop %v2188
        %v2239 = vmul.f32 1.0, %v2238
        %v2240 = vrcp.pop %v2189
        %v2241 = vmul.f32 1.0, %v2240
        %v2242 = vrcp.pop %v2190
        %v2243 = vmul.f32 1.0, %v2242
        %v2244 = vrcp.pop %v2191
        %v2245 = vmul.f32 1.0, %v2244
        %v2246 = vrcp.pop %v2192
        %v2247 = vmul.f32 1.0, %v2246
        %v2248 = vrcp.pop %v2193
        %v2249 = vmul.f32 1.0, %v2248
        %v2250 = vrcp.pop %v2194
        %v2251 = vmul.f32 1.0, %v2250
        %v2252 = vrcp.pop %v2195
        %v2253 = vmul.f32 1.0, %v2252
        %v2254 = vrcp.pop %v2196
        %v2255 = vmul.f32 1.0, %v2254
        %v2256 = vrcp.pop %v2197
        %v2257 = vmul.f32 1.0, %v2256
        %v2258 = vrcp.pop %v2198
        %v2259 = vmul.f32 1.0, %v2258
        %v2260 = vrcp.pop %v2199
        %v2261 = vmul.f32 1.0, %v2260
        %v2262 = vrcp.pop %v2200
        %v2263 = vmul.f32 1.0, %v2262
        %v2264 = vrcp.pop %v2201
        %v2265 = vmul.f32 1.0, %v2264
        %2266 = vst [vmem:[%s253 + $0x28] sm:$0xff] %v2203
        %2267 = vst [vmem:[%s253 + $0x68] sm:$0xff] %v2205
        %2268 = vst [vmem:[%s253 + $0xa8] sm:$0xff] %v2207
        %2269 = vst [vmem:[%s253 + $0xe8] sm:$0xff] %v2209
        %2270 = vst [vmem:[%s253 + $0x128] sm:$0xff] %v2211
        %2271 = vst [vmem:[%s253 + $0x168] sm:$0xff] %v2213
        %2272 = vst [vmem:[%s253 + $0x1a8] sm:$0xff] %v2215
        %2273 = vst [vmem:[%s253 + $0x1e8] sm:$0xff] %v2217
        %2274 = vst [vmem:[%s253 + $0x228] sm:$0xff] %v2219
        %2275 = vst [vmem:[%s253 + $0x268] sm:$0xff] %v2221
        %2276 = vst [vmem:[%s253 + $0x2a8] sm:$0xff] %v2223
        %2277 = vst [vmem:[%s253 + $0x2e8] sm:$0xff] %v2225
        %2278 = vst [vmem:[%s253 + $0x328] sm:$0xff] %v2227
        %2279 = vst [vmem:[%s253 + $0x368] sm:$0xff] %v2229
        %2280 = vst [vmem:[%s253 + $0x3a8] sm:$0xff] %v2231
        %2281 = vst [vmem:[%s253 + $0x3e8] sm:$0xff] %v2233
        %2282 = vst [vmem:[%s253 + $0x428] sm:$0xff] %v2235
        %2283 = vst [vmem:[%s253 + $0x468] sm:$0xff] %v2237
        %2284 = vst [vmem:[%s253 + $0x4a8] sm:$0xff] %v2239
        %2285 = vst [vmem:[%s253 + $0x4e8] sm:$0xff] %v2241
        %2286 = vst [vmem:[%s253 + $0x528] sm:$0xff] %v2243
        %2287 = vst [vmem:[%s253 + $0x568] sm:$0xff] %v2245
        %2288 = vst [vmem:[%s253 + $0x5a8] sm:$0xff] %v2247
        %2289 = vst [vmem:[%s253 + $0x5e8] sm:$0xff] %v2249
        %2290 = vst [vmem:[%s253 + $0x628] sm:$0xff] %v2251
        %2291 = vst [vmem:[%s253 + $0x668] sm:$0xff] %v2253
        %2292 = vst [vmem:[%s253 + $0x6a8] sm:$0xff] %v2255
        %2293 = vst [vmem:[%s253 + $0x6e8] sm:$0xff] %v2257
        %2294 = vst [vmem:[%s253 + $0x728] sm:$0xff] %v2259
        %2295 = vst [vmem:[%s253 + $0x768] sm:$0xff] %v2261
        %2296 = vst [vmem:[%s253 + $0x7a8] sm:$0xff] %v2263
        %2297 = vst [vmem:[%s253 + $0x7e8] sm:$0xff] %v2265
        %v2298 = vld [vmem:[#allocation5 + $0x6] sm:$0x1]
        %v2299 = vld [vmem:[#allocation7 + $0x6] sm:$0x1]
        %v2300 = vld [vmem:[#allocation8 + $0x6] sm:$0x1]
        %v2301 = vlaneseq
        %v2302 = vshrl.u32 %v2301, 7
        %v2303 = vsub.s32 0, %v2302
        %v2304 = vrot.slane %v2298, %v2303
        %v2305 = vmul.f32 %v256, %v2304
        %v2306 = vmul.f32 %v257, %v2304
        %v2307 = vmul.f32 %v258, %v2304
        %v2308 = vmul.f32 %v259, %v2304
        %v2309 = vmul.f32 %v260, %v2304
        %v2310 = vmul.f32 %v261, %v2304
        %v2311 = vmul.f32 %v262, %v2304
        %v2312 = vmul.f32 %v263, %v2304
        %v2313 = vmul.f32 %v264, %v2304
        %v2314 = vmul.f32 %v265, %v2304
        %v2315 = vmul.f32 %v266, %v2304
        %v2316 = vmul.f32 %v267, %v2304
        %v2317 = vmul.f32 %v268, %v2304
        %v2318 = vmul.f32 %v269, %v2304
        %v2319 = vmul.f32 %v270, %v2304
        %v2320 = vmul.f32 %v271, %v2304
        %v2321 = vmul.f32 %v272, %v2304
        %v2322 = vmul.f32 %v273, %v2304
        %v2323 = vmul.f32 %v274, %v2304
        %v2324 = vmul.f32 %v275, %v2304
        %v2325 = vmul.f32 %v276, %v2304
        %v2326 = vmul.f32 %v277, %v2304
        %v2327 = vmul.f32 %v278, %v2304
        %v2328 = vmul.f32 %v279, %v2304
        %v2329 = vmul.f32 %v280, %v2304
        %v2330 = vmul.f32 %v281, %v2304
        %v2331 = vmul.f32 %v282, %v2304
        %v2332 = vmul.f32 %v283, %v2304
        %v2333 = vmul.f32 %v284, %v2304
        %v2334 = vmul.f32 %v285, %v2304
        %v2335 = vmul.f32 %v286, %v2304
        %v2336 = vmul.f32 %v287, %v2304
        %v2337 = vlaneseq
        %v2338 = vshrl.u32 %v2337, 7
        %v2339 = vsub.s32 0, %v2338
        %v2340 = vrot.slane %v2299, %v2339
        %v2341 = vsub.f32 %v2305, %v2340
        %v2342 = vsub.f32 %v2306, %v2340
        %v2343 = vsub.f32 %v2307, %v2340
        %v2344 = vsub.f32 %v2308, %v2340
        %v2345 = vsub.f32 %v2309, %v2340
        %v2346 = vsub.f32 %v2310, %v2340
        %v2347 = vsub.f32 %v2311, %v2340
        %v2348 = vsub.f32 %v2312, %v2340
        %v2349 = vsub.f32 %v2313, %v2340
        %v2350 = vsub.f32 %v2314, %v2340
        %v2351 = vsub.f32 %v2315, %v2340
        %v2352 = vsub.f32 %v2316, %v2340
        %v2353 = vsub.f32 %v2317, %v2340
        %v2354 = vsub.f32 %v2318, %v2340
        %v2355 = vsub.f32 %v2319, %v2340
        %v2356 = vsub.f32 %v2320, %v2340
        %v2357 = vsub.f32 %v2321, %v2340
        %v2358 = vsub.f32 %v2322, %v2340
        %v2359 = vsub.f32 %v2323, %v2340
        %v2360 = vsub.f32 %v2324, %v2340
        %v2361 = vsub.f32 %v2325, %v2340
        %v2362 = vsub.f32 %v2326, %v2340
        %v2363 = vsub.f32 %v2327, %v2340
        %v2364 = vsub.f32 %v2328, %v2340
        %v2365 = vsub.f32 %v2329, %v2340
        %v2366 = vsub.f32 %v2330, %v2340
        %v2367 = vsub.f32 %v2331, %v2340
        %v2368 = vsub.f32 %v2332, %v2340
        %v2369 = vsub.f32 %v2333, %v2340
        %v2370 = vsub.f32 %v2334, %v2340
        %v2371 = vsub.f32 %v2335, %v2340
        %v2372 = vsub.f32 %v2336, %v2340
        %v2373 = vlaneseq
        %v2374 = vshrl.u32 %v2373, 7
        %v2375 = vsub.s32 0, %v2374
        %v2376 = vrot.slane %v2300, %v2375
        %v2377 = vmul.f32 %v2376, %v2341
        %v2378 = vmul.f32 %v2376, %v2342
        %v2379 = vmul.f32 %v2376, %v2343
        %v2380 = vmul.f32 %v2376, %v2344
        %v2381 = vmul.f32 %v2376, %v2345
        %v2382 = vmul.f32 %v2376, %v2346
        %v2383 = vmul.f32 %v2376, %v2347
        %v2384 = vmul.f32 %v2376, %v2348
        %v2385 = vmul.f32 %v2376, %v2349
        %v2386 = vmul.f32 %v2376, %v2350
        %v2387 = vmul.f32 %v2376, %v2351
        %v2388 = vmul.f32 %v2376, %v2352
        %v2389 = vmul.f32 %v2376, %v2353
        %v2390 = vmul.f32 %v2376, %v2354
        %v2391 = vmul.f32 %v2376, %v2355
        %v2392 = vmul.f32 %v2376, %v2356
        %v2393 = vmul.f32 %v2376, %v2357
        %v2394 = vmul.f32 %v2376, %v2358
        %v2395 = vmul.f32 %v2376, %v2359
        %v2396 = vmul.f32 %v2376, %v2360
        %v2397 = vmul.f32 %v2376, %v2361
        %v2398 = vmul.f32 %v2376, %v2362
        %v2399 = vmul.f32 %v2376, %v2363
        %v2400 = vmul.f32 %v2376, %v2364
        %v2401 = vmul.f32 %v2376, %v2365
        %v2402 = vmul.f32 %v2376, %v2366
        %v2403 = vmul.f32 %v2376, %v2367
        %v2404 = vmul.f32 %v2376, %v2368
        %v2405 = vmul.f32 %v2376, %v2369
        %v2406 = vmul.f32 %v2376, %v2370
        %v2407 = vmul.f32 %v2376, %v2371
        %v2408 = vmul.f32 %v2376, %v2372
        %v2409 = vsub.f32 0.0, %v2377
        %v2410 = vsub.f32 0.0, %v2378
        %v2411 = vsub.f32 0.0, %v2379
        %v2412 = vsub.f32 0.0, %v2380
        %v2413 = vsub.f32 0.0, %v2381
        %v2414 = vsub.f32 0.0, %v2382
        %v2415 = vsub.f32 0.0, %v2383
        %v2416 = vsub.f32 0.0, %v2384
        %v2417 = vsub.f32 0.0, %v2385
        %v2418 = vsub.f32 0.0, %v2386
        %v2419 = vsub.f32 0.0, %v2387
        %v2420 = vsub.f32 0.0, %v2388
        %v2421 = vsub.f32 0.0, %v2389
        %v2422 = vsub.f32 0.0, %v2390
        %v2423 = vsub.f32 0.0, %v2391
        %v2424 = vsub.f32 0.0, %v2392
        %v2425 = vsub.f32 0.0, %v2393
        %v2426 = vsub.f32 0.0, %v2394
        %v2427 = vsub.f32 0.0, %v2395
        %v2428 = vsub.f32 0.0, %v2396
        %v2429 = vsub.f32 0.0, %v2397
        %v2430 = vsub.f32 0.0, %v2398
        %v2431 = vsub.f32 0.0, %v2399
        %v2432 = vsub.f32 0.0, %v2400
        %v2433 = vsub.f32 0.0, %v2401
        %v2434 = vsub.f32 0.0, %v2402
        %v2435 = vsub.f32 0.0, %v2403
        %v2436 = vsub.f32 0.0, %v2404
        %v2437 = vsub.f32 0.0, %v2405
        %v2438 = vsub.f32 0.0, %v2406
        %v2439 = vsub.f32 0.0, %v2407
        %v2440 = vsub.f32 0.0, %v2408
        %v2441 = vmul.f32 %v2409, 1.442695
        %v2442 = vpow.pop %v2441
        %v2443 = vmul.f32 %v2410, 1.442695
        %v2444 = vpow.pop %v2443
        %v2445 = vmul.f32 %v2411, 1.442695
        %v2446 = vpow.pop %v2445
        %v2447 = vmul.f32 %v2412, 1.442695
        %v2448 = vpow.pop %v2447
        %v2449 = vmul.f32 %v2413, 1.442695
        %v2450 = vpow.pop %v2449
        %v2451 = vmul.f32 %v2414, 1.442695
        %v2452 = vpow.pop %v2451
        %v2453 = vmul.f32 %v2415, 1.442695
        %v2454 = vpow.pop %v2453
        %v2455 = vmul.f32 %v2416, 1.442695
        %v2456 = vpow.pop %v2455
        %v2457 = vmul.f32 %v2417, 1.442695
        %v2458 = vpow.pop %v2457
        %v2459 = vmul.f32 %v2418, 1.442695
        %v2460 = vpow.pop %v2459
        %v2461 = vmul.f32 %v2419, 1.442695
        %v2462 = vpow.pop %v2461
        %v2463 = vmul.f32 %v2420, 1.442695
        %v2464 = vpow.pop %v2463
        %v2465 = vmul.f32 %v2421, 1.442695
        %v2466 = vpow.pop %v2465
        %v2467 = vmul.f32 %v2422, 1.442695
        %v2468 = vpow.pop %v2467
        %v2469 = vmul.f32 %v2423, 1.442695
        %v2470 = vpow.pop %v2469
        %v2471 = vmul.f32 %v2424, 1.442695
        %v2472 = vpow.pop %v2471
        %v2473 = vmul.f32 %v2425, 1.442695
        %v2474 = vpow.pop %v2473
        %v2475 = vmul.f32 %v2426, 1.442695
        %v2476 = vpow.pop %v2475
        %v2477 = vmul.f32 %v2427, 1.442695
        %v2478 = vpow.pop %v2477
        %v2479 = vmul.f32 %v2428, 1.442695
        %v2480 = vpow.pop %v2479
        %v2481 = vmul.f32 %v2429, 1.442695
        %v2482 = vpow.pop %v2481
        %v2483 = vmul.f32 %v2430, 1.442695
        %v2484 = vpow.pop %v2483
        %v2485 = vmul.f32 %v2431, 1.442695
        %v2486 = vpow.pop %v2485
        %v2487 = vmul.f32 %v2432, 1.442695
        %v2488 = vpow.pop %v2487
        %v2489 = vmul.f32 %v2433, 1.442695
        %v2490 = vpow.pop %v2489
        %v2491 = vmul.f32 %v2434, 1.442695
        %v2492 = vpow.pop %v2491
        %v2493 = vmul.f32 %v2435, 1.442695
        %v2494 = vpow.pop %v2493
        %v2495 = vmul.f32 %v2436, 1.442695
        %v2496 = vpow.pop %v2495
        %v2497 = vmul.f32 %v2437, 1.442695
        %v2498 = vpow.pop %v2497
        %v2499 = vmul.f32 %v2438, 1.442695
        %v2500 = vpow.pop %v2499
        %v2501 = vmul.f32 %v2439, 1.442695
        %v2502 = vpow.pop %v2501
        %v2503 = vmul.f32 %v2440, 1.442695
        %v2504 = vpow.pop %v2503
        %v2505 = vadd.f32 %v2442, 1.0
        %v2506 = vadd.f32 %v2444, 1.0
        %v2507 = vadd.f32 %v2446, 1.0
        %v2508 = vadd.f32 %v2448, 1.0
        %v2509 = vadd.f32 %v2450, 1.0
        %v2510 = vadd.f32 %v2452, 1.0
        %v2511 = vadd.f32 %v2454, 1.0
        %v2512 = vadd.f32 %v2456, 1.0
        %v2513 = vadd.f32 %v2458, 1.0
        %v2514 = vadd.f32 %v2460, 1.0
        %v2515 = vadd.f32 %v2462, 1.0
        %v2516 = vadd.f32 %v2464, 1.0
        %v2517 = vadd.f32 %v2466, 1.0
        %v2518 = vadd.f32 %v2468, 1.0
        %v2519 = vadd.f32 %v2470, 1.0
        %v2520 = vadd.f32 %v2472, 1.0
        %v2521 = vadd.f32 %v2474, 1.0
        %v2522 = vadd.f32 %v2476, 1.0
        %v2523 = vadd.f32 %v2478, 1.0
        %v2524 = vadd.f32 %v2480, 1.0
        %v2525 = vadd.f32 %v2482, 1.0
        %v2526 = vadd.f32 %v2484, 1.0
        %v2527 = vadd.f32 %v2486, 1.0
        %v2528 = vadd.f32 %v2488, 1.0
        %v2529 = vadd.f32 %v2490, 1.0
        %v2530 = vadd.f32 %v2492, 1.0
        %v2531 = vadd.f32 %v2494, 1.0
        %v2532 = vadd.f32 %v2496, 1.0
        %v2533 = vadd.f32 %v2498, 1.0
        %v2534 = vadd.f32 %v2500, 1.0
        %v2535 = vadd.f32 %v2502, 1.0
        %v2536 = vadd.f32 %v2504, 1.0
        %v2537 = vrcp.pop %v2505
        %v2538 = vmul.f32 1.0, %v2537
        %v2539 = vrcp.pop %v2506
        %v2540 = vmul.f32 1.0, %v2539
        %v2541 = vrcp.pop %v2507
        %v2542 = vmul.f32 1.0, %v2541
        %v2543 = vrcp.pop %v2508
        %v2544 = vmul.f32 1.0, %v2543
        %v2545 = vrcp.pop %v2509
        %v2546 = vmul.f32 1.0, %v2545
        %v2547 = vrcp.pop %v2510
        %v2548 = vmul.f32 1.0, %v2547
        %v2549 = vrcp.pop %v2511
        %v2550 = vmul.f32 1.0, %v2549
        %v2551 = vrcp.pop %v2512
        %v2552 = vmul.f32 1.0, %v2551
        %v2553 = vrcp.pop %v2513
        %v2554 = vmul.f32 1.0, %v2553
        %v2555 = vrcp.pop %v2514
        %v2556 = vmul.f32 1.0, %v2555
        %v2557 = vrcp.pop %v2515
        %v2558 = vmul.f32 1.0, %v2557
        %v2559 = vrcp.pop %v2516
        %v2560 = vmul.f32 1.0, %v2559
        %v2561 = vrcp.pop %v2517
        %v2562 = vmul.f32 1.0, %v2561
        %v2563 = vrcp.pop %v2518
        %v2564 = vmul.f32 1.0, %v2563
        %v2565 = vrcp.pop %v2519
        %v2566 = vmul.f32 1.0, %v2565
        %v2567 = vrcp.pop %v2520
        %v2568 = vmul.f32 1.0, %v2567
        %v2569 = vrcp.pop %v2521
        %v2570 = vmul.f32 1.0, %v2569
        %v2571 = vrcp.pop %v2522
        %v2572 = vmul.f32 1.0, %v2571
        %v2573 = vrcp.pop %v2523
        %v2574 = vmul.f32 1.0, %v2573
        %v2575 = vrcp.pop %v2524
        %v2576 = vmul.f32 1.0, %v2575
        %v2577 = vrcp.pop %v2525
        %v2578 = vmul.f32 1.0, %v2577
        %v2579 = vrcp.pop %v2526
        %v2580 = vmul.f32 1.0, %v2579
        %v2581 = vrcp.pop %v2527
        %v2582 = vmul.f32 1.0, %v2581
        %v2583 = vrcp.pop %v2528
        %v2584 = vmul.f32 1.0, %v2583
        %v2585 = vrcp.pop %v2529
        %v2586 = vmul.f32 1.0, %v2585
        %v2587 = vrcp.pop %v2530
        %v2588 = vmul.f32 1.0, %v2587
        %v2589 = vrcp.pop %v2531
        %v2590 = vmul.f32 1.0, %v2589
        %v2591 = vrcp.pop %v2532
        %v2592 = vmul.f32 1.0, %v2591
        %v2593 = vrcp.pop %v2533
        %v2594 = vmul.f32 1.0, %v2593
        %v2595 = vrcp.pop %v2534
        %v2596 = vmul.f32 1.0, %v2595
        %v2597 = vrcp.pop %v2535
        %v2598 = vmul.f32 1.0, %v2597
        %v2599 = vrcp.pop %v2536
        %v2600 = vmul.f32 1.0, %v2599
        %2601 = vst [vmem:[%s253 + $0x30] sm:$0xff] %v2538
        %2602 = vst [vmem:[%s253 + $0x70] sm:$0xff] %v2540
        %2603 = vst [vmem:[%s253 + $0xb0] sm:$0xff] %v2542
        %2604 = vst [vmem:[%s253 + $0xf0] sm:$0xff] %v2544
        %2605 = vst [vmem:[%s253 + $0x130] sm:$0xff] %v2546
        %2606 = vst [vmem:[%s253 + $0x170] sm:$0xff] %v2548
        %2607 = vst [vmem:[%s253 + $0x1b0] sm:$0xff] %v2550
        %2608 = vst [vmem:[%s253 + $0x1f0] sm:$0xff] %v2552
        %2609 = vst [vmem:[%s253 + $0x230] sm:$0xff] %v2554
        %2610 = vst [vmem:[%s253 + $0x270] sm:$0xff] %v2556
        %2611 = vst [vmem:[%s253 + $0x2b0] sm:$0xff] %v2558
        %2612 = vst [vmem:[%s253 + $0x2f0] sm:$0xff] %v2560
        %2613 = vst [vmem:[%s253 + $0x330] sm:$0xff] %v2562
        %2614 = vst [vmem:[%s253 + $0x370] sm:$0xff] %v2564
        %2615 = vst [vmem:[%s253 + $0x3b0] sm:$0xff] %v2566
        %2616 = vst [vmem:[%s253 + $0x3f0] sm:$0xff] %v2568
        %2617 = vst [vmem:[%s253 + $0x430] sm:$0xff] %v2570
        %2618 = vst [vmem:[%s253 + $0x470] sm:$0xff] %v2572
        %2619 = vst [vmem:[%s253 + $0x4b0] sm:$0xff] %v2574
        %2620 = vst [vmem:[%s253 + $0x4f0] sm:$0xff] %v2576
        %2621 = vst [vmem:[%s253 + $0x530] sm:$0xff] %v2578
        %2622 = vst [vmem:[%s253 + $0x570] sm:$0xff] %v2580
        %2623 = vst [vmem:[%s253 + $0x5b0] sm:$0xff] %v2582
        %2624 = vst [vmem:[%s253 + $0x5f0] sm:$0xff] %v2584
        %2625 = vst [vmem:[%s253 + $0x630] sm:$0xff] %v2586
        %2626 = vst [vmem:[%s253 + $0x670] sm:$0xff] %v2588
        %2627 = vst [vmem:[%s253 + $0x6b0] sm:$0xff] %v2590
        %2628 = vst [vmem:[%s253 + $0x6f0] sm:$0xff] %v2592
        %2629 = vst [vmem:[%s253 + $0x730] sm:$0xff] %v2594
        %2630 = vst [vmem:[%s253 + $0x770] sm:$0xff] %v2596
        %2631 = vst [vmem:[%s253 + $0x7b0] sm:$0xff] %v2598
        %2632 = vst [vmem:[%s253 + $0x7f0] sm:$0xff] %v2600
        %v2633 = vld [vmem:[#allocation5 + $0x7] sm:$0x1]
        %v2634 = vld [vmem:[#allocation7 + $0x7] sm:$0x1]
        %v2635 = vld [vmem:[#allocation8 + $0x7] sm:$0x1]
        %v2636 = vlaneseq
        %v2637 = vshrl.u32 %v2636, 7
        %v2638 = vsub.s32 0, %v2637
        %v2639 = vrot.slane %v2633, %v2638
        %v2640 = vmul.f32 %v256, %v2639
        %v2641 = vmul.f32 %v257, %v2639
        %v2642 = vmul.f32 %v258, %v2639
        %v2643 = vmul.f32 %v259, %v2639
        %v2644 = vmul.f32 %v260, %v2639
        %v2645 = vmul.f32 %v261, %v2639
        %v2646 = vmul.f32 %v262, %v2639
        %v2647 = vmul.f32 %v263, %v2639
        %v2648 = vmul.f32 %v264, %v2639
        %v2649 = vmul.f32 %v265, %v2639
        %v2650 = vmul.f32 %v266, %v2639
        %v2651 = vmul.f32 %v267, %v2639
        %v2652 = vmul.f32 %v268, %v2639
        %v2653 = vmul.f32 %v269, %v2639
        %v2654 = vmul.f32 %v270, %v2639
        %v2655 = vmul.f32 %v271, %v2639
        %v2656 = vmul.f32 %v272, %v2639
        %v2657 = vmul.f32 %v273, %v2639
        %v2658 = vmul.f32 %v274, %v2639
        %v2659 = vmul.f32 %v275, %v2639
        %v2660 = vmul.f32 %v276, %v2639
        %v2661 = vmul.f32 %v277, %v2639
        %v2662 = vmul.f32 %v278, %v2639
        %v2663 = vmul.f32 %v279, %v2639
        %v2664 = vmul.f32 %v280, %v2639
        %v2665 = vmul.f32 %v281, %v2639
        %v2666 = vmul.f32 %v282, %v2639
        %v2667 = vmul.f32 %v283, %v2639
        %v2668 = vmul.f32 %v284, %v2639
        %v2669 = vmul.f32 %v285, %v2639
        %v2670 = vmul.f32 %v286, %v2639
        %v2671 = vmul.f32 %v287, %v2639
        %v2672 = vlaneseq
        %v2673 = vshrl.u32 %v2672, 7
        %v2674 = vsub.s32 0, %v2673
        %v2675 = vrot.slane %v2634, %v2674
        %v2676 = vsub.f32 %v2640, %v2675
        %v2677 = vsub.f32 %v2641, %v2675
        %v2678 = vsub.f32 %v2642, %v2675
        %v2679 = vsub.f32 %v2643, %v2675
        %v2680 = vsub.f32 %v2644, %v2675
        %v2681 = vsub.f32 %v2645, %v2675
        %v2682 = vsub.f32 %v2646, %v2675
        %v2683 = vsub.f32 %v2647, %v2675
        %v2684 = vsub.f32 %v2648, %v2675
        %v2685 = vsub.f32 %v2649, %v2675
        %v2686 = vsub.f32 %v2650, %v2675
        %v2687 = vsub.f32 %v2651, %v2675
        %v2688 = vsub.f32 %v2652, %v2675
        %v2689 = vsub.f32 %v2653, %v2675
        %v2690 = vsub.f32 %v2654, %v2675
        %v2691 = vsub.f32 %v2655, %v2675
        %v2692 = vsub.f32 %v2656, %v2675
        %v2693 = vsub.f32 %v2657, %v2675
        %v2694 = vsub.f32 %v2658, %v2675
        %v2695 = vsub.f32 %v2659, %v2675
        %v2696 = vsub.f32 %v2660, %v2675
        %v2697 = vsub.f32 %v2661, %v2675
        %v2698 = vsub.f32 %v2662, %v2675
        %v2699 = vsub.f32 %v2663, %v2675
        %v2700 = vsub.f32 %v2664, %v2675
        %v2701 = vsub.f32 %v2665, %v2675
        %v2702 = vsub.f32 %v2666, %v2675
        %v2703 = vsub.f32 %v2667, %v2675
        %v2704 = vsub.f32 %v2668, %v2675
        %v2705 = vsub.f32 %v2669, %v2675
        %v2706 = vsub.f32 %v2670, %v2675
        %v2707 = vsub.f32 %v2671, %v2675
        %v2708 = vlaneseq
        %v2709 = vshrl.u32 %v2708, 7
        %v2710 = vsub.s32 0, %v2709
        %v2711 = vrot.slane %v2635, %v2710
        %v2712 = vmul.f32 %v2711, %v2676
        %v2713 = vmul.f32 %v2711, %v2677
        %v2714 = vmul.f32 %v2711, %v2678
        %v2715 = vmul.f32 %v2711, %v2679
        %v2716 = vmul.f32 %v2711, %v2680
        %v2717 = vmul.f32 %v2711, %v2681
        %v2718 = vmul.f32 %v2711, %v2682
        %v2719 = vmul.f32 %v2711, %v2683
        %v2720 = vmul.f32 %v2711, %v2684
        %v2721 = vmul.f32 %v2711, %v2685
        %v2722 = vmul.f32 %v2711, %v2686
        %v2723 = vmul.f32 %v2711, %v2687
        %v2724 = vmul.f32 %v2711, %v2688
        %v2725 = vmul.f32 %v2711, %v2689
        %v2726 = vmul.f32 %v2711, %v2690
        %v2727 = vmul.f32 %v2711, %v2691
        %v2728 = vmul.f32 %v2711, %v2692
        %v2729 = vmul.f32 %v2711, %v2693
        %v2730 = vmul.f32 %v2711, %v2694
        %v2731 = vmul.f32 %v2711, %v2695
        %v2732 = vmul.f32 %v2711, %v2696
        %v2733 = vmul.f32 %v2711, %v2697
        %v2734 = vmul.f32 %v2711, %v2698
        %v2735 = vmul.f32 %v2711, %v2699
        %v2736 = vmul.f32 %v2711, %v2700
        %v2737 = vmul.f32 %v2711, %v2701
        %v2738 = vmul.f32 %v2711, %v2702
        %v2739 = vmul.f32 %v2711, %v2703
        %v2740 = vmul.f32 %v2711, %v2704
        %v2741 = vmul.f32 %v2711, %v2705
        %v2742 = vmul.f32 %v2711, %v2706
        %v2743 = vmul.f32 %v2711, %v2707
        %v2744 = vsub.f32 0.0, %v2712
        %v2745 = vsub.f32 0.0, %v2713
        %v2746 = vsub.f32 0.0, %v2714
        %v2747 = vsub.f32 0.0, %v2715
        %v2748 = vsub.f32 0.0, %v2716
        %v2749 = vsub.f32 0.0, %v2717
        %v2750 = vsub.f32 0.0, %v2718
        %v2751 = vsub.f32 0.0, %v2719
        %v2752 = vsub.f32 0.0, %v2720
        %v2753 = vsub.f32 0.0, %v2721
        %v2754 = vsub.f32 0.0, %v2722
        %v2755 = vsub.f32 0.0, %v2723
        %v2756 = vsub.f32 0.0, %v2724
        %v2757 = vsub.f32 0.0, %v2725
        %v2758 = vsub.f32 0.0, %v2726
        %v2759 = vsub.f32 0.0, %v2727
        %v2760 = vsub.f32 0.0, %v2728
        %v2761 = vsub.f32 0.0, %v2729
        %v2762 = vsub.f32 0.0, %v2730
        %v2763 = vsub.f32 0.0, %v2731
        %v2764 = vsub.f32 0.0, %v2732
        %v2765 = vsub.f32 0.0, %v2733
        %v2766 = vsub.f32 0.0, %v2734
        %v2767 = vsub.f32 0.0, %v2735
        %v2768 = vsub.f32 0.0, %v2736
        %v2769 = vsub.f32 0.0, %v2737
        %v2770 = vsub.f32 0.0, %v2738
        %v2771 = vsub.f32 0.0, %v2739
        %v2772 = vsub.f32 0.0, %v2740
        %v2773 = vsub.f32 0.0, %v2741
        %v2774 = vsub.f32 0.0, %v2742
        %v2775 = vsub.f32 0.0, %v2743
        %v2776 = vmul.f32 %v2744, 1.442695
        %v2777 = vpow.pop %v2776
        %v2778 = vmul.f32 %v2745, 1.442695
        %v2779 = vpow.pop %v2778
        %v2780 = vmul.f32 %v2746, 1.442695
        %v2781 = vpow.pop %v2780
        %v2782 = vmul.f32 %v2747, 1.442695
        %v2783 = vpow.pop %v2782
        %v2784 = vmul.f32 %v2748, 1.442695
        %v2785 = vpow.pop %v2784
        %v2786 = vmul.f32 %v2749, 1.442695
        %v2787 = vpow.pop %v2786
        %v2788 = vmul.f32 %v2750, 1.442695
        %v2789 = vpow.pop %v2788
        %v2790 = vmul.f32 %v2751, 1.442695
        %v2791 = vpow.pop %v2790
        %v2792 = vmul.f32 %v2752, 1.442695
        %v2793 = vpow.pop %v2792
        %v2794 = vmul.f32 %v2753, 1.442695
        %v2795 = vpow.pop %v2794
        %v2796 = vmul.f32 %v2754, 1.442695
        %v2797 = vpow.pop %v2796
        %v2798 = vmul.f32 %v2755, 1.442695
        %v2799 = vpow.pop %v2798
        %v2800 = vmul.f32 %v2756, 1.442695
        %v2801 = vpow.pop %v2800
        %v2802 = vmul.f32 %v2757, 1.442695
        %v2803 = vpow.pop %v2802
        %v2804 = vmul.f32 %v2758, 1.442695
        %v2805 = vpow.pop %v2804
        %v2806 = vmul.f32 %v2759, 1.442695
        %v2807 = vpow.pop %v2806
        %v2808 = vmul.f32 %v2760, 1.442695
        %v2809 = vpow.pop %v2808
        %v2810 = vmul.f32 %v2761, 1.442695
        %v2811 = vpow.pop %v2810
        %v2812 = vmul.f32 %v2762, 1.442695
        %v2813 = vpow.pop %v2812
        %v2814 = vmul.f32 %v2763, 1.442695
        %v2815 = vpow.pop %v2814
        %v2816 = vmul.f32 %v2764, 1.442695
        %v2817 = vpow.pop %v2816
        %v2818 = vmul.f32 %v2765, 1.442695
        %v2819 = vpow.pop %v2818
        %v2820 = vmul.f32 %v2766, 1.442695
        %v2821 = vpow.pop %v2820
        %v2822 = vmul.f32 %v2767, 1.442695
        %v2823 = vpow.pop %v2822
        %v2824 = vmul.f32 %v2768, 1.442695
        %v2825 = vpow.pop %v2824
        %v2826 = vmul.f32 %v2769, 1.442695
        %v2827 = vpow.pop %v2826
        %v2828 = vmul.f32 %v2770, 1.442695
        %v2829 = vpow.pop %v2828
        %v2830 = vmul.f32 %v2771, 1.442695
        %v2831 = vpow.pop %v2830
        %v2832 = vmul.f32 %v2772, 1.442695
        %v2833 = vpow.pop %v2832
        %v2834 = vmul.f32 %v2773, 1.442695
        %v2835 = vpow.pop %v2834
        %v2836 = vmul.f32 %v2774, 1.442695
        %v2837 = vpow.pop %v2836
        %v2838 = vmul.f32 %v2775, 1.442695
        %v2839 = vpow.pop %v2838
        %v2840 = vadd.f32 %v2777, 1.0
        %v2841 = vadd.f32 %v2779, 1.0
        %v2842 = vadd.f32 %v2781, 1.0
        %v2843 = vadd.f32 %v2783, 1.0
        %v2844 = vadd.f32 %v2785, 1.0
        %v2845 = vadd.f32 %v2787, 1.0
        %v2846 = vadd.f32 %v2789, 1.0
        %v2847 = vadd.f32 %v2791, 1.0
        %v2848 = vadd.f32 %v2793, 1.0
        %v2849 = vadd.f32 %v2795, 1.0
        %v2850 = vadd.f32 %v2797, 1.0
        %v2851 = vadd.f32 %v2799, 1.0
        %v2852 = vadd.f32 %v2801, 1.0
        %v2853 = vadd.f32 %v2803, 1.0
        %v2854 = vadd.f32 %v2805, 1.0
        %v2855 = vadd.f32 %v2807, 1.0
        %v2856 = vadd.f32 %v2809, 1.0
        %v2857 = vadd.f32 %v2811, 1.0
        %v2858 = vadd.f32 %v2813, 1.0
        %v2859 = vadd.f32 %v2815, 1.0
        %v2860 = vadd.f32 %v2817, 1.0
        %v2861 = vadd.f32 %v2819, 1.0
        %v2862 = vadd.f32 %v2821, 1.0
        %v2863 = vadd.f32 %v2823, 1.0
        %v2864 = vadd.f32 %v2825, 1.0
        %v2865 = vadd.f32 %v2827, 1.0
        %v2866 = vadd.f32 %v2829, 1.0
        %v2867 = vadd.f32 %v2831, 1.0
        %v2868 = vadd.f32 %v2833, 1.0
        %v2869 = vadd.f32 %v2835, 1.0
        %v2870 = vadd.f32 %v2837, 1.0
        %v2871 = vadd.f32 %v2839, 1.0
        %v2872 = vrcp.pop %v2840
        %v2873 = vmul.f32 1.0, %v2872
        %v2874 = vrcp.pop %v2841
        %v2875 = vmul.f32 1.0, %v2874
        %v2876 = vrcp.pop %v2842
        %v2877 = vmul.f32 1.0, %v2876
        %v2878 = vrcp.pop %v2843
        %v2879 = vmul.f32 1.0, %v2878
        %v2880 = vrcp.pop %v2844
        %v2881 = vmul.f32 1.0, %v2880
        %v2882 = vrcp.pop %v2845
        %v2883 = vmul.f32 1.0, %v2882
        %v2884 = vrcp.pop %v2846
        %v2885 = vmul.f32 1.0, %v2884
        %v2886 = vrcp.pop %v2847
        %v2887 = vmul.f32 1.0, %v2886
        %v2888 = vrcp.pop %v2848
        %v2889 = vmul.f32 1.0, %v2888
        %v2890 = vrcp.pop %v2849
        %v2891 = vmul.f32 1.0, %v2890
        %v2892 = vrcp.pop %v2850
        %v2893 = vmul.f32 1.0, %v2892
        %v2894 = vrcp.pop %v2851
        %v2895 = vmul.f32 1.0, %v2894
        %v2896 = vrcp.pop %v2852
        %v2897 = vmul.f32 1.0, %v2896
        %v2898 = vrcp.pop %v2853
        %v2899 = vmul.f32 1.0, %v2898
        %v2900 = vrcp.pop %v2854
        %v2901 = vmul.f32 1.0, %v2900
        %v2902 = vrcp.pop %v2855
        %v2903 = vmul.f32 1.0, %v2902
        %v2904 = vrcp.pop %v2856
        %v2905 = vmul.f32 1.0, %v2904
        %v2906 = vrcp.pop %v2857
        %v2907 = vmul.f32 1.0, %v2906
        %v2908 = vrcp.pop %v2858
        %v2909 = vmul.f32 1.0, %v2908
        %v2910 = vrcp.pop %v2859
        %v2911 = vmul.f32 1.0, %v2910
        %v2912 = vrcp.pop %v2860
        %v2913 = vmul.f32 1.0, %v2912
        %v2914 = vrcp.pop %v2861
        %v2915 = vmul.f32 1.0, %v2914
        %v2916 = vrcp.pop %v2862
        %v2917 = vmul.f32 1.0, %v2916
        %v2918 = vrcp.pop %v2863
        %v2919 = vmul.f32 1.0, %v2918
        %v2920 = vrcp.pop %v2864
        %v2921 = vmul.f32 1.0, %v2920
        %v2922 = vrcp.pop %v2865
        %v2923 = vmul.f32 1.0, %v2922
        %v2924 = vrcp.pop %v2866
        %v2925 = vmul.f32 1.0, %v2924
        %v2926 = vrcp.pop %v2867
        %v2927 = vmul.f32 1.0, %v2926
        %v2928 = vrcp.pop %v2868
        %v2929 = vmul.f32 1.0, %v2928
        %v2930 = vrcp.pop %v2869
        %v2931 = vmul.f32 1.0, %v2930
        %v2932 = vrcp.pop %v2870
        %v2933 = vmul.f32 1.0, %v2932
        %v2934 = vrcp.pop %v2871
        %v2935 = vmul.f32 1.0, %v2934
        %2936 = vst [vmem:[%s253 + $0x38] sm:$0xff] %v2873
        %2937 = vst [vmem:[%s253 + $0x78] sm:$0xff] %v2875
        %2938 = vst [vmem:[%s253 + $0xb8] sm:$0xff] %v2877
        %2939 = vst [vmem:[%s253 + $0xf8] sm:$0xff] %v2879
        %2940 = vst [vmem:[%s253 + $0x138] sm:$0xff] %v2881
        %2941 = vst [vmem:[%s253 + $0x178] sm:$0xff] %v2883
        %2942 = vst [vmem:[%s253 + $0x1b8] sm:$0xff] %v2885
        %2943 = vst [vmem:[%s253 + $0x1f8] sm:$0xff] %v2887
        %2944 = vst [vmem:[%s253 + $0x238] sm:$0xff] %v2889
        %2945 = vst [vmem:[%s253 + $0x278] sm:$0xff] %v2891
        %2946 = vst [vmem:[%s253 + $0x2b8] sm:$0xff] %v2893
        %2947 = vst [vmem:[%s253 + $0x2f8] sm:$0xff] %v2895
        %2948 = vst [vmem:[%s253 + $0x338] sm:$0xff] %v2897
        %2949 = vst [vmem:[%s253 + $0x378] sm:$0xff] %v2899
        %2950 = vst [vmem:[%s253 + $0x3b8] sm:$0xff] %v2901
        %2951 = vst [vmem:[%s253 + $0x3f8] sm:$0xff] %v2903
        %2952 = vst [vmem:[%s253 + $0x438] sm:$0xff] %v2905
        %2953 = vst [vmem:[%s253 + $0x478] sm:$0xff] %v2907
        %2954 = vst [vmem:[%s253 + $0x4b8] sm:$0xff] %v2909
        %2955 = vst [vmem:[%s253 + $0x4f8] sm:$0xff] %v2911
        %2956 = vst [vmem:[%s253 + $0x538] sm:$0xff] %v2913
        %2957 = vst [vmem:[%s253 + $0x578] sm:$0xff] %v2915
        %2958 = vst [vmem:[%s253 + $0x5b8] sm:$0xff] %v2917
        %2959 = vst [vmem:[%s253 + $0x5f8] sm:$0xff] %v2919
        %2960 = vst [vmem:[%s253 + $0x638] sm:$0xff] %v2921
        %2961 = vst [vmem:[%s253 + $0x678] sm:$0xff] %v2923
        %2962 = vst [vmem:[%s253 + $0x6b8] sm:$0xff] %v2925
        %2963 = vst [vmem:[%s253 + $0x6f8] sm:$0xff] %v2927
        %2964 = vst [vmem:[%s253 + $0x738] sm:$0xff] %v2929
        %2965 = vst [vmem:[%s253 + $0x778] sm:$0xff] %v2931
        %2966 = vst [vmem:[%s253 + $0x7b8] sm:$0xff] %v2933
        %2967 = vst [vmem:[%s253 + $0x7f8] sm:$0xff] %v2935
        %s2968 = sand.u32 %s120, 1
        %s2969 = scalar_lea.sflag [#allocation4], %s2968
        %s2970 = sand.u32 %s120, 1
        %s2971 = smul.addr %s2970, 2048
        %s2972 = scalar_lea.vmem [#allocation10], %s2971
        // Predicated region
        $region53: #{tpu_custom_call.1} parent=35 // pred_check
          %p2973 = pneg %p130
        $region54: #{tpu_custom_call.1} parent=35 // pred_check_branch
          %2975 = sbr.rel (%p2973) target = $region56
        $region55: #{tpu_custom_call.1} parent=35 // pred_region
          %s2976 = smul.u32 32, %s23
          %s2978 = ssub.s32 32768, 32768
          %2979 = vsyncadd %s2969, %s2978
          %s2980 = smul.addr %s2976, 8
          %s2981 = smul.addr %s2980, 128
          %s2982 = scalar_lea.hbm %s4, %s2981
          %s2983 = sshll.u32 %s2972, 4
          %s2984 = int_to_ptr.vmem [resolvable:$true] %s2983
          %2989 = dma.vmem_to_hbm [thread:$0]  %s2984, 32768, %s2982, %s2969, 1024, 1024, 64
        $region56: #{tpu_custom_call.1} parent=35 // pred_fallthru
          _
      $region36: #{tpu_custom_call.1} parent=5 // pred_fallthru
        _
      %p2990 = scmp.le.s32.totalorder 2, %s18
      // Predicated region
      $region57: #{tpu_custom_call.1} parent=5 // pred_check
        %p2991 = pneg %p2990
      $region58: #{tpu_custom_call.1} parent=5 // pred_check_branch
        %2993 = sbr.rel (%p2991) target = $region60
      $region59: #{tpu_custom_call.1} parent=5 // pred_region
        %s2994 = ssub.s32 %s18, 2
        // Predicated region
        $region61: #{tpu_custom_call.1} parent=59 // pred_check
          %p2995 = pneg %p136
        $region62: #{tpu_custom_call.1} parent=59 // pred_check_branch
          %2997 = sbr.rel (%p2995) target = $region64
        $region63: #{tpu_custom_call.1} parent=59 // pred_region
          %s2998 = sand.u32 %s121, 1
          %s2999 = scalar_lea.sflag [#allocation4], %s2998
          %s3000 = sand.u32 %s121, 1
          %s3001 = smul.addr %s3000, 2048
          %s3002 = scalar_lea.vmem [#allocation10], %s3001
          %3003 = dma.done %s2999, 32768
        $region64: #{tpu_custom_call.1} parent=59 // pred_fallthru
          _
      $region60: #{tpu_custom_call.1} parent=5 // pred_fallthru
        _
    $region6: #{tpu_custom_call.1} parent=1 // loop_footer
      %s22 = sadd.s32 1, %s18
    $region7: #{tpu_custom_call.1} parent=1 // loop_footer_branch
      %17 = sbr.rel target = $region3
    $region8: #{tpu_custom_call.1} parent=1 // loop_exit
      _
    %3004 = vsyncpa [#allocation3], 1
    %s3005 = scalar_lea.sflag [#allocation3], 1
    %3006 = vsyncpa %s3005, 1
    %3007 = vsyncpa [#allocation6], 1
    %3008 = vsyncpa [#allocation9], 1
    %3009 = vsyncpa [#allocation4], 1
    %s3010 = scalar_lea.sflag [#allocation4], 1
    %3011 = vsyncpa %s3010, 1

</llo_original>
